<compile_context>
chip_gen: v5e
topology: v5e:2x2
jax: 0.10.0
libtpu: 0.0.40
codegen_flags: <defaults>
</compile_context>

<pallas_src>
import functools
import math

import jax
import jax.numpy as jnp
from jax.experimental import pallas as pl
from jax.experimental.pallas import tpu as pltpu


def _round_up(a, b):
    return ((a + b - 1) // b) * b


def _block_diag(w, k):
    """(R, C) -> (k*R, k*C) block-diagonal matrix with `w` on the diagonal."""
    if k == 1:
        return w
    r, c = w.shape
    eye = jnp.eye(k, dtype=w.dtype)
    bd = (eye[:, :, None, None] * w[None, None, :, :]).transpose(0, 2, 1, 3)
    return bd.reshape(k * r, k * c)


def _lane_target():
    """256-lane output pack on v6e/v7x (2x256 MXU); 128 on v5e and older."""
    try:
        kind = jax.devices()[0].device_kind.lower()
    except Exception:
        return 128
    for tag in ("v2", "v3", "v4", "v5"):
        if tag in kind:
            return 128
    return 256


def _make_kernel(row_chunk, n_chunks):
    """Fused Linear->ReLU->Linear over one (tile, Hk) packed node block.

    The tile is processed in `n_chunks` static row sub-chunks so the f32
    intermediate stays small; both matmuls run on the MXU with f32
    accumulation, bias add + ReLU stay on the f32 accumulator (v5e-safe).
    """
    def kernel(x_ref, w1_ref, b1_ref, w2_ref, b2_ref, o_ref):
        w1 = w1_ref[...]
        w2 = w2_ref[...]
        b1 = b1_ref[...]
        b2 = b2_ref[...]
        for c in range(n_chunks):
            r0 = c * row_chunk                      # static, sublane-aligned
            xs = x_ref[pl.ds(r0, row_chunk), :]
            h = jnp.dot(xs, w1, preferred_element_type=jnp.float32)
            h = jnp.maximum(h + b1, 0.0)
            # Downcast only to feed the MXU; accumulation stays f32.
            y = jnp.dot(h.astype(w2.dtype), w2,
                        preferred_element_type=jnp.float32)
            o_ref[pl.ds(r0, row_chunk), :] = (y + b2).astype(o_ref.dtype)
    return kernel


def decoder_forward(x, w1, b1, w2, b2, *, tile_rows=1024, compute_dtype=None,
                    single_buffer_params=True):
    """psi(x) = ReLU(x @ w1 + b1) @ w2 + b2 applied row-wise to x of shape (N, H)."""
    N, H = x.shape
    F = w2.shape[1]
    out_dtype = x.dtype
    # Compute dtype follows the input dtype so x.astype() is a no-op
    # (feed bf16 end-to-end for half the HBM traffic on this mem-bound kernel).
    if compute_dtype is None:
        compute_dtype = x.dtype
    comp_bytes = jnp.dtype(compute_dtype).itemsize
    out_bytes = jnp.dtype(out_dtype).itemsize

    # ---- lane-dense packing: fold k node rows into one lane-aligned row -----
    # 256-lane target on v6e/v7x, 128 on v5e.  Guardrails cap the block-diagonal
    # FLOP inflation (k) and resident weight width (k*H <= 2048, v7x VMEM-safe).
    lane = _lane_target()
    k_cap = 8 if lane == 128 else 16
    hk_cap = 2048
    k = lane // math.gcd(F, lane)
    if k > k_cap or k * H > hk_cap:
        k = 128 // math.gcd(F, 128)     # try the narrower 128-lane pack
    if k > k_cap or k * H > hk_cap:
        k = 1                           # fallback: no packing
    Hk = k * H
    # k == 1 fallback: keep stores lane-dense by zero-padding the output
    # feature dim to 128 (no masked vst.msk); slice back to F at the end.
    Fk = k * F if k > 1 else _round_up(F, 128)

    # ---- pack x: pad only to a multiple of k (skip the copy when possible);
    # the grid uses cdiv so the ragged last block needs no tile-multiple pad.
    n_packed = pl.cdiv(N, k)
    rows_pad = n_packed * k - N
    xc = x if x.dtype == jnp.dtype(compute_dtype) else x.astype(compute_dtype)
    if rows_pad:
        xc = jnp.pad(xc, ((0, rows_pad), (0, 0)))
    x_packed = xc.reshape(n_packed, Hk)           # row-major reshape: pure view

    w1_p = _block_diag(w1.astype(compute_dtype), k)                  # (Hk, Hk)
    w2_p = _block_diag(w2.astype(compute_dtype), k)                  # (Hk, k*F)
    b1_p = jnp.tile(b1.reshape(1, H).astype(jnp.float32), (1, k))    # (1, Hk)
    b2_p = jnp.tile(b2.reshape(1, F).astype(jnp.float32), (1, k))    # (1, k*F)
    if Fk != k * F:                               # k == 1 lane-padding path
        w2_p = jnp.pad(w2_p, ((0, 0), (0, Fk - k * F)))
        b2_p = jnp.pad(b2_p, ((0, 0), (0, Fk - k * F)))

    # ---- tile size: VMEM-budgeted (v7x 64 MiB safe) but capped so the grid
    # keeps >= ~8 steps for megacore sharding + DMA/compute overlap.
    vmem_budget = 40 << 20
    per_row = 2 * (Hk * comp_bytes + Fk * out_bytes)   # double-buffered x + out
    resident = comp_bytes * (Hk * Hk + Hk * Fk) + 4 * (Hk + Fk)
    tile_vmem = max(8, ((max(vmem_budget - resident, per_row * 8) // per_row)
                        // 8) * 8)
    tile_steps = max(8, _round_up(pl.cdiv(n_packed, 8), 8))
    tile = max(8, min(max(8, (tile_rows // 8) * 8), tile_vmem, tile_steps,
                      _round_up(n_packed, 8)))
    grid = (pl.cdiv(n_packed, tile),)

    # Sub-chunk large tiles so the f32 intermediate stays small (v5e store path).
    row_chunk = tile
    for c in (256, 128, 64):
        if tile > c and tile % c == 0:
            row_chunk = c
            break
    n_chunks = tile // row_chunk

    vmem_limit = int(min(64 << 20,
                         max(32 << 20,
                             _round_up(resident + per_row * tile + (4 << 20),
                                       1 << 20))))

    cost = pl.CostEstimate(
        # Actual MXU work (block-diagonal zeros and padded rows included).
        flops=2 * grid[0] * tile * Hk * (Hk + Fk),
        transcendentals=0,
        bytes_accessed=(n_packed * Hk * comp_bytes
                        + n_packed * Fk * out_bytes
                        + (w1_p.size + w2_p.size) * comp_bytes
                        + (b1_p.size + b2_p.size) * 4),
    )

    # Resident (constant-index) params: single pipeline buffer to halve their
    # VMEM footprint; streamed x / out tiles keep default double buffering.
    resident_kw = dict(pipeline_mode=pl.Buffered(1)) if single_buffer_params else {}

    out = pl.pallas_call(
        _make_kernel(row_chunk, n_chunks),
        out_shape=jax.ShapeDtypeStruct((n_packed, Fk), out_dtype),
        grid_spec=pltpu.PrefetchScalarGridSpec(
            num_scalar_prefetch=0,
            grid=grid,
            in_specs=[
                pl.BlockSpec((tile, Hk), lambda i: (i, 0)),              # x (streamed)
                pl.BlockSpec((Hk, Hk), lambda i: (0, 0), **resident_kw),  # w1
                pl.BlockSpec((1, Hk), lambda i: (0, 0), **resident_kw),   # b1
                pl.BlockSpec((Hk, Fk), lambda i: (0, 0), **resident_kw),  # w2
                pl.BlockSpec((1, Fk), lambda i: (0, 0), **resident_kw),   # b2
            ],
            out_specs=pl.BlockSpec((tile, Fk), lambda i: (i, 0)),
        ),
        compiler_params=pltpu.CompilerParams(
            dimension_semantics=("parallel",),      # node axis -> megacore
            vmem_limit_bytes=vmem_limit),
        cost_estimate=cost,
    )(x_packed, w1_p, b1_p, w2_p, b2_p)

    # Un-pack.  Under jit the reshape/slice fuses with downstream consumers.
    if k == 1:
        return out[:N, :F]
    return out.reshape(n_packed * k, F)[:N]


def reference_forward(x, w1, b1, w2, b2, compute_dtype=None):
    """Reference matching the kernel's rounding of matmul inputs/outputs."""
    if compute_dtype is None:
        compute_dtype = x.dtype
    f32 = jnp.float32
    hi = jax.lax.Precision.HIGHEST
    xq = x.astype(compute_dtype).astype(f32)
    w1q = w1.astype(compute_dtype).astype(f32)
    w2q = w2.astype(compute_dtype).astype(f32)
    h = jnp.maximum(jnp.dot(xq, w1q, precision=hi) + b1.reshape(1, -1).astype(f32), 0.0)
    hq = h.astype(compute_dtype).astype(f32)
    y = jnp.dot(hq, w2q, precision=hi) + b2.reshape(1, -1).astype(f32)
    return y.astype(x.dtype)


if __name__ == "__main__":
    key = jax.random.PRNGKey(0)
    N = 300            # number of nodes (deliberately ragged vs. pack/tile)
    H = 32             # hidden_features
    F_OUT = 16         # node_features (decoder output width)

    kx, kw1, kb1, kw2, kb2 = jax.random.split(key, 5)
    # bf16 node features end-to-end: kernel-side astype is a no-op and the
    # output writeback is halved for this memory-bound kernel.
    x = jax.random.normal(kx, (N, H), dtype=jnp.float32).astype(jnp.bfloat16)

    # Deterministic parameter init (synthetic psi MLP: Linear-ReLU-Linear).
    w1 = jax.random.normal(kw1, (H, H), dtype=jnp.float32) * (1.0 / jnp.sqrt(H))
    b1 = jax.random.normal(kb1, (H,), dtype=jnp.float32) * 0.01
    w2 = jax.random.normal(kw2, (H, F_OUT), dtype=jnp.float32) * (1.0 / jnp.sqrt(H))
    b2 = jax.random.normal(kb2, (F_OUT,), dtype=jnp.float32) * 0.01

    run = jax.jit(decoder_forward)
    try:
        out = jax.block_until_ready(run(x, w1, b1, w2, b2))
    except Exception:
        # Fallback if this JAX build rejects pipeline_mode=pl.Buffered(1).
        run = jax.jit(functools.partial(decoder_forward, single_buffer_params=False))
        out = jax.block_until_ready(run(x, w1, b1, w2, b2))

    ref = reference_forward(x, w1, b1, w2, b2)
    assert out.shape == (N, F_OUT)
    assert out.dtype == x.dtype
    ok = jnp.allclose(out.astype(jnp.float32), ref.astype(jnp.float32),
                      atol=3e-2, rtol=3e-2)
    assert bool(ok), "mismatch vs reference"

    print("KERNEL_OK")
</pallas_src>

<mosaic_0001>
module attributes {stable_mosaic.version = 11 : i64} {
  func.func @kernel(%arg0: i32, %arg1: memref<8x512xbf16, #tpu.memory_space<vmem>>, %arg2: memref<512x512xbf16, #tpu.memory_space<vmem>>, %arg3: memref<1x512xf32, #tpu.memory_space<vmem>>, %arg4: memref<512x256xbf16, #tpu.memory_space<vmem>>, %arg5: memref<1x256xf32, #tpu.memory_space<vmem>>, %arg6: memref<8x256xbf16, #tpu.memory_space<vmem>>) attributes {dimension_semantics = [#tpu.dimension_semantics<parallel>], iteration_bounds = array<i64: 3>, scalar_prefetch = 0 : i64, scratch_operands = 0 : i64, tpu.core_type = #tpu.core_type<tc>, window_params = [{transform_indices = @transform_0, window_bounds = array<i64: 8, 512>}, {pipeline_mode = #tpu.pipeline_mode<synchronous>, transform_indices = @transform_1, window_bounds = array<i64: 512, 512>}, {pipeline_mode = #tpu.pipeline_mode<synchronous>, transform_indices = @transform_2, window_bounds = array<i64: 1, 512>}, {pipeline_mode = #tpu.pipeline_mode<synchronous>, transform_indices = @transform_3, window_bounds = array<i64: 512, 256>}, {pipeline_mode = #tpu.pipeline_mode<synchronous>, transform_indices = @transform_4, window_bounds = array<i64: 1, 256>}, {transform_indices = @transform_5, window_bounds = array<i64: 8, 256>}]} {
    %c0 = arith.constant 0 : index
    %c0_0 = arith.constant 0 : index
    %0 = vector.load %arg2[%c0, %c0_0] : memref<512x512xbf16, #tpu.memory_space<vmem>>, vector<512x512xbf16>
    %c0_1 = arith.constant 0 : index
    %c0_2 = arith.constant 0 : index
    %1 = vector.load %arg4[%c0_1, %c0_2] : memref<512x256xbf16, #tpu.memory_space<vmem>>, vector<512x256xbf16>
    %c0_3 = arith.constant 0 : index
    %c0_4 = arith.constant 0 : index
    %2 = vector.load %arg3[%c0_3, %c0_4] : memref<1x512xf32, #tpu.memory_space<vmem>>, vector<1x512xf32>
    %c0_5 = arith.constant 0 : index
    %c0_6 = arith.constant 0 : index
    %3 = vector.load %arg5[%c0_5, %c0_6] : memref<1x256xf32, #tpu.memory_space<vmem>>, vector<1x256xf32>
    %c0_7 = arith.constant 0 : index
    %c0_8 = arith.constant 0 : index
    %4 = vector.load %arg1[%c0_7, %c0_8] : memref<8x512xbf16, #tpu.memory_space<vmem>>, vector<8x512xbf16>
    %cst = arith.constant dense<0.000000e+00> : vector<8x512xf32>
    %5 = tpu.matmul %4, %0, %cst {dimension_numbers = #tpu.dot_dimension_numbers<[1], [0], [0], [1], [0, 0, 1, 1], [], []>} : vector<8x512xbf16>, vector<512x512xbf16>, vector<8x512xf32> -> vector<8x512xf32>
    %6 = vector.broadcast %2 : vector<1x512xf32> to vector<8x512xf32>
    %7 = arith.addf %5, %6 : vector<8x512xf32>
    %cst_9 = arith.constant 0.000000e+00 : f32
    %8 = vector.broadcast %cst_9 : f32 to vector<8x512xf32>
    %9 = arith.maximumf %7, %8 : vector<8x512xf32>
    %10 = arith.truncf %9 : vector<8x512xf32> to vector<8x512xbf16>
    %cst_10 = arith.constant dense<0.000000e+00> : vector<8x256xf32>
    %11 = tpu.matmul %10, %1, %cst_10 {dimension_numbers = #tpu.dot_dimension_numbers<[1], [0], [0], [1], [0, 0, 1, 1], [], []>} : vector<8x512xbf16>, vector<512x256xbf16>, vector<8x256xf32> -> vector<8x256xf32>
    %12 = vector.broadcast %3 : vector<1x256xf32> to vector<8x256xf32>
    %13 = arith.addf %11, %12 : vector<8x256xf32>
    %14 = arith.truncf %13 : vector<8x256xf32> to vector<8x256xbf16>
    %c0_11 = arith.constant 0 : index
    %c0_12 = arith.constant 0 : index
    %15 = vector.load %arg6[%c0_11, %c0_12] : memref<8x256xbf16, #tpu.memory_space<vmem>>, vector<8x256xbf16>
    tpu.vector_store %arg6[%c0_11, %c0_12], %14 {strides = array<i32>} : memref<8x256xbf16, #tpu.memory_space<vmem>>, vector<8x256xbf16>,
    return
  }
  func.func @transform_0(%arg0: i32) -> (i32, i32) {
    %c0_i32 = arith.constant 0 : i32
    %c0_i32_0 = arith.constant 0 : i32
    return %arg0, %c0_i32 : i32, i32
  }
  func.func @transform_1(%arg0: i32) -> (i32, i32) {
    %c0_i32 = arith.constant 0 : i32
    %c0_i32_0 = arith.constant 0 : i32
    %c0_i32_1 = arith.constant 0 : i32
    return %c0_i32, %c0_i32_0 : i32, i32
  }
  func.func @transform_2(%arg0: i32) -> (i32, i32) {
    %c0_i32 = arith.constant 0 : i32
    %c0_i32_0 = arith.constant 0 : i32
    %c0_i32_1 = arith.constant 0 : i32
    return %c0_i32, %c0_i32_0 : i32, i32
  }
  func.func @transform_3(%arg0: i32) -> (i32, i32) {
    %c0_i32 = arith.constant 0 : i32
    %c0_i32_0 = arith.constant 0 : i32
    %c0_i32_1 = arith.constant 0 : i32
    return %c0_i32, %c0_i32_0 : i32, i32
  }
  func.func @transform_4(%arg0: i32) -> (i32, i32) {
    %c0_i32 = arith.constant 0 : i32
    %c0_i32_0 = arith.constant 0 : i32
    %c0_i32_1 = arith.constant 0 : i32
    return %c0_i32, %c0_i32_0 : i32, i32
  }
  func.func @transform_5(%arg0: i32) -> (i32, i32) {
    %c0_i32 = arith.constant 0 : i32
    %c0_i32_0 = arith.constant 0 : i32
    return %arg0, %c0_i32 : i32, i32
  }
}

module attributes {stable_mosaic.version = 11 : i64} {
  func.func @kernel(%arg0: i32, %arg1: memref<8x512xbf16, #tpu.memory_space<vmem>>, %arg2: memref<512x512xbf16, #tpu.memory_space<vmem>>, %arg3: memref<1x512xf32, #tpu.memory_space<vmem>>, %arg4: memref<512x256xbf16, #tpu.memory_space<vmem>>, %arg5: memref<1x256xf32, #tpu.memory_space<vmem>>, %arg6: memref<8x256xbf16, #tpu.memory_space<vmem>>) attributes {dimension_semantics = [#tpu.dimension_semantics<parallel>], iteration_bounds = array<i64: 3>, scalar_prefetch = 0 : i64, scratch_operands = 0 : i64, tpu.core_type = #tpu.core_type<tc>, window_params = [{transform_indices = @transform_0, window_bounds = array<i64: 8, 512>}, {pipeline_mode = #tpu.pipeline_mode<synchronous>, transform_indices = @transform_1, window_bounds = array<i64: 512, 512>}, {pipeline_mode = #tpu.pipeline_mode<synchronous>, transform_indices = @transform_2, window_bounds = array<i64: 1, 512>}, {pipeline_mode = #tpu.pipeline_mode<synchronous>, transform_indices = @transform_3, window_bounds = array<i64: 512, 256>}, {pipeline_mode = #tpu.pipeline_mode<synchronous>, transform_indices = @transform_4, window_bounds = array<i64: 1, 256>}, {transform_indices = @transform_5, window_bounds = array<i64: 8, 256>}]} {
    %c0 = arith.constant 0 : index
    %c0_0 = arith.constant 0 : index
    %0 = vector.load %arg2[%c0, %c0_0] : memref<512x512xbf16, #tpu.memory_space<vmem>>, vector<512x512xbf16>
    %c0_1 = arith.constant 0 : index
    %c0_2 = arith.constant 0 : index
    %1 = vector.load %arg4[%c0_1, %c0_2] : memref<512x256xbf16, #tpu.memory_space<vmem>>, vector<512x256xbf16>
    %c0_3 = arith.constant 0 : index
    %c0_4 = arith.constant 0 : index
    %2 = vector.load %arg3[%c0_3, %c0_4] : memref<1x512xf32, #tpu.memory_space<vmem>>, vector<1x512xf32>
    %c0_5 = arith.constant 0 : index
    %c0_6 = arith.constant 0 : index
    %3 = vector.load %arg5[%c0_5, %c0_6] : memref<1x256xf32, #tpu.memory_space<vmem>>, vector<1x256xf32>
    %c0_7 = arith.constant 0 : index
    %c0_8 = arith.constant 0 : index
    %4 = vector.load %arg1[%c0_7, %c0_8] : memref<8x512xbf16, #tpu.memory_space<vmem>>, vector<8x512xbf16>
    %cst = arith.constant dense<0.000000e+00> : vector<8x512xf32>
    %5 = tpu.matmul %4, %0, %cst {dimension_numbers = #tpu.dot_dimension_numbers<[1], [0], [0], [1], [0, 0, 1, 1], [], []>} : vector<8x512xbf16>, vector<512x512xbf16>, vector<8x512xf32> -> vector<8x512xf32>
    %6 = vector.broadcast %2 : vector<1x512xf32> to vector<8x512xf32>
    %7 = arith.addf %5, %6 : vector<8x512xf32>
    %cst_9 = arith.constant 0.000000e+00 : f32
    %8 = vector.broadcast %cst_9 : f32 to vector<8x512xf32>
    %9 = arith.maximumf %7, %8 : vector<8x512xf32>
    %10 = arith.truncf %9 : vector<8x512xf32> to vector<8x512xbf16>
    %cst_10 = arith.constant dense<0.000000e+00> : vector<8x256xf32>
    %11 = tpu.matmul %10, %1, %cst_10 {dimension_numbers = #tpu.dot_dimension_numbers<[1], [0], [0], [1], [0, 0, 1, 1], [], []>} : vector<8x512xbf16>, vector<512x256xbf16>, vector<8x256xf32> -> vector<8x256xf32>
    %12 = vector.broadcast %3 : vector<1x256xf32> to vector<8x256xf32>
    %13 = arith.addf %11, %12 : vector<8x256xf32>
    %14 = arith.truncf %13 : vector<8x256xf32> to vector<8x256xbf16>
    %c0_11 = arith.constant 0 : index
    %c0_12 = arith.constant 0 : index
    %15 = vector.load %arg6[%c0_11, %c0_12] : memref<8x256xbf16, #tpu.memory_space<vmem>>, vector<8x256xbf16>
    tpu.vector_store %arg6[%c0_11, %c0_12], %14 {strides = array<i32>} : memref<8x256xbf16, #tpu.memory_space<vmem>>, vector<8x256xbf16>,
    return
  }
  func.func @transform_0(%arg0: i32) -> (i32, i32) {
    %c0_i32 = arith.constant 0 : i32
    %c0_i32_0 = arith.constant 0 : i32
    return %arg0, %c0_i32 : i32, i32
  }
  func.func @transform_1(%arg0: i32) -> (i32, i32) {
    %c0_i32 = arith.constant 0 : i32
    %c0_i32_0 = arith.constant 0 : i32
    %c0_i32_1 = arith.constant 0 : i32
    return %c0_i32, %c0_i32_0 : i32, i32
  }
  func.func @transform_2(%arg0: i32) -> (i32, i32) {
    %c0_i32 = arith.constant 0 : i32
    %c0_i32_0 = arith.constant 0 : i32
    %c0_i32_1 = arith.constant 0 : i32
    return %c0_i32, %c0_i32_0 : i32, i32
  }
  func.func @transform_3(%arg0: i32) -> (i32, i32) {
    %c0_i32 = arith.constant 0 : i32
    %c0_i32_0 = arith.constant 0 : i32
    %c0_i32_1 = arith.constant 0 : i32
    return %c0_i32, %c0_i32_0 : i32, i32
  }
  func.func @transform_4(%arg0: i32) -> (i32, i32) {
    %c0_i32 = arith.constant 0 : i32
    %c0_i32_0 = arith.constant 0 : i32
    %c0_i32_1 = arith.constant 0 : i32
    return %c0_i32, %c0_i32_0 : i32, i32
  }
  func.func @transform_5(%arg0: i32) -> (i32, i32) {
    %c0_i32 = arith.constant 0 : i32
    %c0_i32_0 = arith.constant 0 : i32
    return %arg0, %c0_i32 : i32, i32
  }
}

</mosaic_0001>

<llo_original>
// kernel: decoder_forward.1
$region0: #{decoder_forward.1}
  #allocation0 [shape = 'u32[]', space=smem, size = 0x4, offset = 0x4, fixed_abs, tag = 'smem constant byte address 0x4 - core index']
  #allocation1 [shape = 'u32[72,128]{1,0:T(1,128)}', space=vmem, size = 0x9000, scoped, tag = 'internal scratch']
  %s0 = inlined_call_operand.vmem [shape: bf16[19,512], index: 0, kind: input, shape index: {}]
  %s1 = inlined_call_operand.vmem [shape: bf16[512,512], index: 1, kind: input, shape index: {}]
  %s2 = inlined_call_operand.vmem [shape: f32[1,512], index: 2, kind: input, shape index: {}]
  %s3 = inlined_call_operand.vmem [shape: bf16[512,256], index: 3, kind: input, shape index: {}]
  %s4 = inlined_call_operand.vmem [shape: f32[1,256], index: 4, kind: input, shape index: {}]
  %s5 = inlined_call_operand.vmem [shape: bf16[19,256], index: 5, kind: output, shape index: {}]
  %s6 = sld [smem:[#allocation0]]
  $region53: #{decoder_forward.1} parent=0
    _
  %s8 = ssub.s32 1, %s6
  %s9 = scalar_select 0, %s8, %s6
  loop: start=0, step=1, limit=5
  $region2: #{decoder_forward.1} parent=0 // loop_pre_header
    _
  $region3: #{decoder_forward.1} parent=0 // loop_header
    %s11 = sphi 0, %s15
    %p12 = scmp.ge.s32.totalorder %s11, 5
    %s21 = sphi 0, %s23
    %s24 = sphi 0, %s21
    %s25 = sphi 0, %s24
    %s41 = sphi 0, %s25
    %s45 = sphi 0, %s45
    %s47 = sphi 0, %s45
    %s48 = sphi 0, %s47
    %s62 = sphi 0, %s48
    %s66 = sphi 0, %s66
    %s68 = sphi 0, %s66
    %s69 = sphi 0, %s68
    %s83 = sphi 0, %s69
    %s87 = sphi 0, %s87
    %s89 = sphi 0, %s87
    %s90 = sphi 0, %s89
    %s104 = sphi 0, %s90
    %s108 = sphi 0, %s108
    %s110 = sphi 0, %s108
    %s111 = sphi 0, %s110
    %s125 = sphi 0, %s111
    %s131 = sphi 0, %s133
    %s134 = sphi 0, %s131
    %s135 = sphi 0, %s134
    %s151 = sphi 0, %s135
  $region4: #{decoder_forward.1} parent=0 // loop_header_branch
    %14 = sbr.rel (%p12) target = $region8
  $region5: #{decoder_forward.1} parent=0 // loop_body
    %s16 = ssub.s32 %s11, 1
    %s17 = ssub.s32 %s11, 2
    %s18 = sadd.s32 %s11, 1
    %s19 = ssub.s32 %s11, %s18
    %p20 = scmp.eq.s32.totalorder %s19, 0
    %s22 = sadd.s32 %s21, 1
    %s23 = scalar_select %p20, %s21, %s22
    %p26 = pneg %p20
    %p27 = scmp.eq.s32.totalorder %s11, 2
    %p28 = por %p26, %p27
    %p29 = scmp.ne.s32.totalorder %s21, %s24
    %p30 = scmp.eq.s32.totalorder %s11, 0
    %p31 = por %p29, %p30
    %p32 = scmp.ne.s32.totalorder %s21, %s24
    %p33 = scmp.eq.s32.totalorder %s16, 2
    %p34 = por %p32, %p33
    %p35 = scmp.ne.s32.totalorder %s24, %s25
    %p36 = scmp.eq.s32.totalorder %s16, 0
    %p37 = por %p35, %p36
    %p38 = scmp.ne.s32.totalorder %s24, %s25
    %p39 = scmp.eq.s32.totalorder %s17, 2
    %p40 = por %p38, %p39
    %p42 = scmp.ne.s32.totalorder %s25, %s41
    %p43 = scmp.eq.s32.totalorder %s17, 0
    %p44 = por %p42, %p43
    %s46 = sadd.s32 %s45, 1
    %p49 = scmp.eq.s32.totalorder %s11, 2
    %p50 = scmp.ne.s32.totalorder %s45, %s47
    %p51 = scmp.eq.s32.totalorder %s11, 0
    %p52 = por %p50, %p51
    %p53 = scmp.ne.s32.totalorder %s45, %s47
    %p54 = scmp.eq.s32.totalorder %s16, 2
    %p55 = por %p53, %p54
    %p56 = scmp.ne.s32.totalorder %s47, %s48
    %p57 = scmp.eq.s32.totalorder %s16, 0
    %p58 = por %p56, %p57
    %p59 = scmp.ne.s32.totalorder %s47, %s48
    %p60 = scmp.eq.s32.totalorder %s17, 2
    %p61 = por %p59, %p60
    %p63 = scmp.ne.s32.totalorder %s48, %s62
    %p64 = scmp.eq.s32.totalorder %s17, 0
    %p65 = por %p63, %p64
    %s67 = sadd.s32 %s66, 1
    %p70 = scmp.eq.s32.totalorder %s11, 2
    %p71 = scmp.ne.s32.totalorder %s66, %s68
    %p72 = scmp.eq.s32.totalorder %s11, 0
    %p73 = por %p71, %p72
    %p74 = scmp.ne.s32.totalorder %s66, %s68
    %p75 = scmp.eq.s32.totalorder %s16, 2
    %p76 = por %p74, %p75
    %p77 = scmp.ne.s32.totalorder %s68, %s69
    %p78 = scmp.eq.s32.totalorder %s16, 0
    %p79 = por %p77, %p78
    %p80 = scmp.ne.s32.totalorder %s68, %s69
    %p81 = scmp.eq.s32.totalorder %s17, 2
    %p82 = por %p80, %p81
    %p84 = scmp.ne.s32.totalorder %s69, %s83
    %p85 = scmp.eq.s32.totalorder %s17, 0
    %p86 = por %p84, %p85
    %s88 = sadd.s32 %s87, 1
    %p91 = scmp.eq.s32.totalorder %s11, 2
    %p92 = scmp.ne.s32.totalorder %s87, %s89
    %p93 = scmp.eq.s32.totalorder %s11, 0
    %p94 = por %p92, %p93
    %p95 = scmp.ne.s32.totalorder %s87, %s89
    %p96 = scmp.eq.s32.totalorder %s16, 2
    %p97 = por %p95, %p96
    %p98 = scmp.ne.s32.totalorder %s89, %s90
    %p99 = scmp.eq.s32.totalorder %s16, 0
    %p100 = por %p98, %p99
    %p101 = scmp.ne.s32.totalorder %s89, %s90
    %p102 = scmp.eq.s32.totalorder %s17, 2
    %p103 = por %p101, %p102
    %p105 = scmp.ne.s32.totalorder %s90, %s104
    %p106 = scmp.eq.s32.totalorder %s17, 0
    %p107 = por %p105, %p106
    %s109 = sadd.s32 %s108, 1
    %p112 = scmp.eq.s32.totalorder %s11, 2
    %p113 = scmp.ne.s32.totalorder %s108, %s110
    %p114 = scmp.eq.s32.totalorder %s11, 0
    %p115 = por %p113, %p114
    %p116 = scmp.ne.s32.totalorder %s108, %s110
    %p117 = scmp.eq.s32.totalorder %s16, 2
    %p118 = por %p116, %p117
    %p119 = scmp.ne.s32.totalorder %s110, %s111
    %p120 = scmp.eq.s32.totalorder %s16, 0
    %p121 = por %p119, %p120
    %p122 = scmp.ne.s32.totalorder %s110, %s111
    %p123 = scmp.eq.s32.totalorder %s17, 2
    %p124 = por %p122, %p123
    %p126 = scmp.ne.s32.totalorder %s111, %s125
    %p127 = scmp.eq.s32.totalorder %s17, 0
    %p128 = por %p126, %p127
    %s129 = ssub.s32 %s11, %s18
    %p130 = scmp.eq.s32.totalorder %s129, 0
    %s132 = sadd.s32 %s131, 1
    %s133 = scalar_select %p130, %s131, %s132
    %p136 = pneg %p130
    %p137 = scmp.eq.s32.totalorder %s11, 2
    %p138 = por %p136, %p137
    %p139 = scmp.ne.s32.totalorder %s131, %s134
    %p140 = scmp.eq.s32.totalorder %s11, 0
    %p141 = por %p139, %p140
    %p142 = scmp.ne.s32.totalorder %s131, %s134
    %p143 = scmp.eq.s32.totalorder %s16, 2
    %p144 = por %p142, %p143
    %p145 = scmp.ne.s32.totalorder %s134, %s135
    %p146 = scmp.eq.s32.totalorder %s16, 0
    %p147 = por %p145, %p146
    %p148 = scmp.ne.s32.totalorder %s134, %s135
    %p149 = scmp.eq.s32.totalorder %s17, 2
    %p150 = por %p148, %p149
    %p152 = scmp.ne.s32.totalorder %s135, %s151
    %p153 = scmp.eq.s32.totalorder %s17, 0
    %p154 = por %p152, %p153
    %p155 = scmp.le.s32.totalorder 1, %s11
    %p156 = scmp.lt.s32.totalorder %s11, 4
    %p157 = pnand %p155, %p156
    %p158 = pneg %p157
    // Predicated region
    $region9: #{decoder_forward.1} parent=5 // pred_check
      _
    $region10: #{decoder_forward.1} parent=5 // pred_check_branch
      %160 = sbr.rel (%p157) target = $region12
    $region11: #{decoder_forward.1} parent=5 // pred_region
      %s161 = ssub.s32 %s11, 1
      // Predicated region
      $region13: #{decoder_forward.1} parent=11 // pred_check
        %p162 = pneg %p58
      $region14: #{decoder_forward.1} parent=11 // pred_check_branch
        %164 = sbr.rel (%p162) target = $region16
      $region15: #{decoder_forward.1} parent=11 // pred_region
        _
      $region16: #{decoder_forward.1} parent=11 // pred_fallthru
        _
      // Predicated region
      $region17: #{decoder_forward.1} parent=11 // pred_check
        %p165 = pneg %p79
      $region18: #{decoder_forward.1} parent=11 // pred_check_branch
        %167 = sbr.rel (%p165) target = $region20
      $region19: #{decoder_forward.1} parent=11 // pred_region
        _
      $region20: #{decoder_forward.1} parent=11 // pred_fallthru
        _
      // Predicated region
      $region21: #{decoder_forward.1} parent=11 // pred_check
        %p168 = pneg %p100
      $region22: #{decoder_forward.1} parent=11 // pred_check_branch
        %170 = sbr.rel (%p168) target = $region24
      $region23: #{decoder_forward.1} parent=11 // pred_region
        _
      $region24: #{decoder_forward.1} parent=11 // pred_fallthru
        _
      // Predicated region
      $region25: #{decoder_forward.1} parent=11 // pred_check
        %p171 = pneg %p121
      $region26: #{decoder_forward.1} parent=11 // pred_check_branch
        %173 = sbr.rel (%p171) target = $region28
      $region27: #{decoder_forward.1} parent=11 // pred_region
        _
      $region28: #{decoder_forward.1} parent=11 // pred_fallthru
        _
    $region12: #{decoder_forward.1} parent=5 // pred_fallthru
      _
    %p174 = scmp.lt.s32.totalorder %s11, 3
    // Predicated region
    $region29: #{decoder_forward.1} parent=5 // pred_check
      %p175 = pneg %p174
    $region30: #{decoder_forward.1} parent=5 // pred_check_branch
      %177 = sbr.rel (%p175) target = $region32
    $region31: #{decoder_forward.1} parent=5 // pred_region
      // Predicated region
      $region33: #{decoder_forward.1} parent=31 // pred_check
        %p178 = pneg %p31
      $region34: #{decoder_forward.1} parent=31 // pred_check_branch
        %180 = sbr.rel (%p178) target = $region36
      $region35: #{decoder_forward.1} parent=31 // pred_region
        %p181 = scmp.lt.s32.totalorder %s11, 2
        %s182 = scalar_select %p181, %s11, 2
        %s183 = smul.addr %s182, 4
        %s184 = smul.addr %s183, 4
        %s185 = scalar_lea.vmem %s0, %s184
      $region36: #{decoder_forward.1} parent=31 // pred_fallthru
        _
    $region32: #{decoder_forward.1} parent=5 // pred_fallthru
      _
    %p186 = scmp.le.s32.totalorder 1, %s11
    %p187 = scmp.lt.s32.totalorder %s11, 4
    %p188 = pnand %p186, %p187
    %p189 = pneg %p188
    // Predicated region
    $region37: #{decoder_forward.1} parent=5 // pred_check
      _
    $region38: #{decoder_forward.1} parent=5 // pred_check_branch
      %191 = sbr.rel (%p188) target = $region40
    $region39: #{decoder_forward.1} parent=5 // pred_region
      %s192 = ssub.s32 %s11, 1
      %p193 = scmp.lt.s32.totalorder %s16, 2
      %s194 = scalar_select %p193, %s16, 2
      %s195 = smul.addr %s194, 4
      %s196 = smul.addr %s195, 4
      %s197 = scalar_lea.vmem %s0, %s196
      %p198 = pneg %p37
      %p199 = pneg %p34
      %p200 = pneg %p58
      %p201 = pneg %p55
      %p202 = pneg %p79
      %p203 = pneg %p76
      %p204 = pneg %p100
      %p205 = pneg %p97
      %p206 = pneg %p121
      %p207 = pneg %p118
      %p208 = pneg %p147
      %p209 = pneg %p144
      %p210 = scmp.lt.s32.totalorder %s16, 2
      %s211 = scalar_select %p210, %s16, 2
      %s212 = smul.addr %s211, 2
      %s213 = smul.addr %s212, 4
      %s214 = scalar_lea.vmem %s5, %s213
      %p215 = scmp.lt.s32.totalorder %s16, 2
      %s216 = scalar_select %p215, %s16, 2
      %s217 = smul.addr %s216, 4
      %s218 = smul.addr %s217, 4
      %s219 = scalar_lea.vmem %s0, %s218
      %p220 = scmp.lt.s32.totalorder %s16, 2
      %s221 = scalar_select %p220, %s16, 2
      %s222 = smul.addr %s221, 2
      %s223 = smul.addr %s222, 4
      %s224 = scalar_lea.vmem %s5, %s223
      %v225 = vld [vmem:[%s1] sm:$0xff]
      %v226 = vld [vmem:[%s1 + $0x8] sm:$0xff]
      %v227 = vld [vmem:[%s1 + $0x10] sm:$0xff]
      %v228 = vld [vmem:[%s1 + $0x18] sm:$0xff]
      %v229 = vld [vmem:[%s1 + $0x20] sm:$0xff]
      %v230 = vld [vmem:[%s1 + $0x28] sm:$0xff]
      %v231 = vld [vmem:[%s1 + $0x30] sm:$0xff]
      %v232 = vld [vmem:[%s1 + $0x38] sm:$0xff]
      %v233 = vld [vmem:[%s1 + $0x40] sm:$0xff]
      %v234 = vld [vmem:[%s1 + $0x48] sm:$0xff]
      %v235 = vld [vmem:[%s1 + $0x50] sm:$0xff]
      %v236 = vld [vmem:[%s1 + $0x58] sm:$0xff]
      %v237 = vld [vmem:[%s1 + $0x60] sm:$0xff]
      %v238 = vld [vmem:[%s1 + $0x68] sm:$0xff]
      %v239 = vld [vmem:[%s1 + $0x70] sm:$0xff]
      %v240 = vld [vmem:[%s1 + $0x78] sm:$0xff]
      %v241 = vld [vmem:[%s1 + $0x80] sm:$0xff]
      %v242 = vld [vmem:[%s1 + $0x88] sm:$0xff]
      %v243 = vld [vmem:[%s1 + $0x90] sm:$0xff]
      %v244 = vld [vmem:[%s1 + $0x98] sm:$0xff]
      %v245 = vld [vmem:[%s1 + $0xa0] sm:$0xff]
      %v246 = vld [vmem:[%s1 + $0xa8] sm:$0xff]
      %v247 = vld [vmem:[%s1 + $0xb0] sm:$0xff]
      %v248 = vld [vmem:[%s1 + $0xb8] sm:$0xff]
      %v249 = vld [vmem:[%s1 + $0xc0] sm:$0xff]
      %v250 = vld [vmem:[%s1 + $0xc8] sm:$0xff]
      %v251 = vld [vmem:[%s1 + $0xd0] sm:$0xff]
      %v252 = vld [vmem:[%s1 + $0xd8] sm:$0xff]
      %v253 = vld [vmem:[%s1 + $0xe0] sm:$0xff]
      %v254 = vld [vmem:[%s1 + $0xe8] sm:$0xff]
      %v255 = vld [vmem:[%s1 + $0xf0] sm:$0xff]
      %v256 = vld [vmem:[%s1 + $0xf8] sm:$0xff]
      %v257 = vld [vmem:[%s1 + $0x100] sm:$0xff]
      %v258 = vld [vmem:[%s1 + $0x108] sm:$0xff]
      %v259 = vld [vmem:[%s1 + $0x110] sm:$0xff]
      %v260 = vld [vmem:[%s1 + $0x118] sm:$0xff]
      %v261 = vld [vmem:[%s1 + $0x120] sm:$0xff]
      %v262 = vld [vmem:[%s1 + $0x128] sm:$0xff]
      %v263 = vld [vmem:[%s1 + $0x130] sm:$0xff]
      %v264 = vld [vmem:[%s1 + $0x138] sm:$0xff]
      %v265 = vld [vmem:[%s1 + $0x140] sm:$0xff]
      %v266 = vld [vmem:[%s1 + $0x148] sm:$0xff]
      %v267 = vld [vmem:[%s1 + $0x150] sm:$0xff]
      %v268 = vld [vmem:[%s1 + $0x158] sm:$0xff]
      %v269 = vld [vmem:[%s1 + $0x160] sm:$0xff]
      %v270 = vld [vmem:[%s1 + $0x168] sm:$0xff]
      %v271 = vld [vmem:[%s1 + $0x170] sm:$0xff]
      %v272 = vld [vmem:[%s1 + $0x178] sm:$0xff]
      %v273 = vld [vmem:[%s1 + $0x180] sm:$0xff]
      %v274 = vld [vmem:[%s1 + $0x188] sm:$0xff]
      %v275 = vld [vmem:[%s1 + $0x190] sm:$0xff]
      %v276 = vld [vmem:[%s1 + $0x198] sm:$0xff]
      %v277 = vld [vmem:[%s1 + $0x1a0] sm:$0xff]
      %v278 = vld [vmem:[%s1 + $0x1a8] sm:$0xff]
      %v279 = vld [vmem:[%s1 + $0x1b0] sm:$0xff]
      %v280 = vld [vmem:[%s1 + $0x1b8] sm:$0xff]
      %v281 = vld [vmem:[%s1 + $0x1c0] sm:$0xff]
      %v282 = vld [vmem:[%s1 + $0x1c8] sm:$0xff]
      %v283 = vld [vmem:[%s1 + $0x1d0] sm:$0xff]
      %v284 = vld [vmem:[%s1 + $0x1d8] sm:$0xff]
      %v285 = vld [vmem:[%s1 + $0x1e0] sm:$0xff]
      %v286 = vld [vmem:[%s1 + $0x1e8] sm:$0xff]
      %v287 = vld [vmem:[%s1 + $0x1f0] sm:$0xff]
      %v288 = vld [vmem:[%s1 + $0x1f8] sm:$0xff]
      %v289 = vld [vmem:[%s1 + $0x200] sm:$0xff]
      %v290 = vld [vmem:[%s1 + $0x208] sm:$0xff]
      %v291 = vld [vmem:[%s1 + $0x210] sm:$0xff]
      %v292 = vld [vmem:[%s1 + $0x218] sm:$0xff]
      %v293 = vld [vmem:[%s1 + $0x220] sm:$0xff]
      %v294 = vld [vmem:[%s1 + $0x228] sm:$0xff]
      %v295 = vld [vmem:[%s1 + $0x230] sm:$0xff]
      %v296 = vld [vmem:[%s1 + $0x238] sm:$0xff]
      %v297 = vld [vmem:[%s1 + $0x240] sm:$0xff]
      %v298 = vld [vmem:[%s1 + $0x248] sm:$0xff]
      %v299 = vld [vmem:[%s1 + $0x250] sm:$0xff]
      %v300 = vld [vmem:[%s1 + $0x258] sm:$0xff]
      %v301 = vld [vmem:[%s1 + $0x260] sm:$0xff]
      %v302 = vld [vmem:[%s1 + $0x268] sm:$0xff]
      %v303 = vld [vmem:[%s1 + $0x270] sm:$0xff]
      %v304 = vld [vmem:[%s1 + $0x278] sm:$0xff]
      %v305 = vld [vmem:[%s1 + $0x280] sm:$0xff]
      %v306 = vld [vmem:[%s1 + $0x288] sm:$0xff]
      %v307 = vld [vmem:[%s1 + $0x290] sm:$0xff]
      %v308 = vld [vmem:[%s1 + $0x298] sm:$0xff]
      %v309 = vld [vmem:[%s1 + $0x2a0] sm:$0xff]
      %v310 = vld [vmem:[%s1 + $0x2a8] sm:$0xff]
      %v311 = vld [vmem:[%s1 + $0x2b0] sm:$0xff]
      %v312 = vld [vmem:[%s1 + $0x2b8] sm:$0xff]
      %v313 = vld [vmem:[%s1 + $0x2c0] sm:$0xff]
      %v314 = vld [vmem:[%s1 + $0x2c8] sm:$0xff]
      %v315 = vld [vmem:[%s1 + $0x2d0] sm:$0xff]
      %v316 = vld [vmem:[%s1 + $0x2d8] sm:$0xff]
      %v317 = vld [vmem:[%s1 + $0x2e0] sm:$0xff]
      %v318 = vld [vmem:[%s1 + $0x2e8] sm:$0xff]
      %v319 = vld [vmem:[%s1 + $0x2f0] sm:$0xff]
      %v320 = vld [vmem:[%s1 + $0x2f8] sm:$0xff]
      %v321 = vld [vmem:[%s1 + $0x300] sm:$0xff]
      %v322 = vld [vmem:[%s1 + $0x308] sm:$0xff]
      %v323 = vld [vmem:[%s1 + $0x310] sm:$0xff]
      %v324 = vld [vmem:[%s1 + $0x318] sm:$0xff]
      %v325 = vld [vmem:[%s1 + $0x320] sm:$0xff]
      %v326 = vld [vmem:[%s1 + $0x328] sm:$0xff]
      %v327 = vld [vmem:[%s1 + $0x330] sm:$0xff]
      %v328 = vld [vmem:[%s1 + $0x338] sm:$0xff]
      %v329 = vld [vmem:[%s1 + $0x340] sm:$0xff]
      %v330 = vld [vmem:[%s1 + $0x348] sm:$0xff]
      %v331 = vld [vmem:[%s1 + $0x350] sm:$0xff]
      %v332 = vld [vmem:[%s1 + $0x358] sm:$0xff]
      %v333 = vld [vmem:[%s1 + $0x360] sm:$0xff]
      %v334 = vld [vmem:[%s1 + $0x368] sm:$0xff]
      %v335 = vld [vmem:[%s1 + $0x370] sm:$0xff]
      %v336 = vld [vmem:[%s1 + $0x378] sm:$0xff]
      %v337 = vld [vmem:[%s1 + $0x380] sm:$0xff]
      %v338 = vld [vmem:[%s1 + $0x388] sm:$0xff]
      %v339 = vld [vmem:[%s1 + $0x390] sm:$0xff]
      %v340 = vld [vmem:[%s1 + $0x398] sm:$0xff]
      %v341 = vld [vmem:[%s1 + $0x3a0] sm:$0xff]
      %v342 = vld [vmem:[%s1 + $0x3a8] sm:$0xff]
      %v343 = vld [vmem:[%s1 + $0x3b0] sm:$0xff]
      %v344 = vld [vmem:[%s1 + $0x3b8] sm:$0xff]
      %v345 = vld [vmem:[%s1 + $0x3c0] sm:$0xff]
      %v346 = vld [vmem:[%s1 + $0x3c8] sm:$0xff]
      %v347 = vld [vmem:[%s1 + $0x3d0] sm:$0xff]
      %v348 = vld [vmem:[%s1 + $0x3d8] sm:$0xff]
      %v349 = vld [vmem:[%s1 + $0x3e0] sm:$0xff]
      %v350 = vld [vmem:[%s1 + $0x3e8] sm:$0xff]
      %v351 = vld [vmem:[%s1 + $0x3f0] sm:$0xff]
      %v352 = vld [vmem:[%s1 + $0x3f8] sm:$0xff]
      %v353 = vld [vmem:[%s3] sm:$0xff]
      %v354 = vld [vmem:[%s3 + $0x8] sm:$0xff]
      %v355 = vld [vmem:[%s3 + $0x10] sm:$0xff]
      %v356 = vld [vmem:[%s3 + $0x18] sm:$0xff]
      %v357 = vld [vmem:[%s3 + $0x20] sm:$0xff]
      %v358 = vld [vmem:[%s3 + $0x28] sm:$0xff]
      %v359 = vld [vmem:[%s3 + $0x30] sm:$0xff]
      %v360 = vld [vmem:[%s3 + $0x38] sm:$0xff]
      %v361 = vld [vmem:[%s3 + $0x40] sm:$0xff]
      %v362 = vld [vmem:[%s3 + $0x48] sm:$0xff]
      %v363 = vld [vmem:[%s3 + $0x50] sm:$0xff]
      %v364 = vld [vmem:[%s3 + $0x58] sm:$0xff]
      %v365 = vld [vmem:[%s3 + $0x60] sm:$0xff]
      %v366 = vld [vmem:[%s3 + $0x68] sm:$0xff]
      %v367 = vld [vmem:[%s3 + $0x70] sm:$0xff]
      %v368 = vld [vmem:[%s3 + $0x78] sm:$0xff]
      %v369 = vld [vmem:[%s3 + $0x80] sm:$0xff]
      %v370 = vld [vmem:[%s3 + $0x88] sm:$0xff]
      %v371 = vld [vmem:[%s3 + $0x90] sm:$0xff]
      %v372 = vld [vmem:[%s3 + $0x98] sm:$0xff]
      %v373 = vld [vmem:[%s3 + $0xa0] sm:$0xff]
      %v374 = vld [vmem:[%s3 + $0xa8] sm:$0xff]
      %v375 = vld [vmem:[%s3 + $0xb0] sm:$0xff]
      %v376 = vld [vmem:[%s3 + $0xb8] sm:$0xff]
      %v377 = vld [vmem:[%s3 + $0xc0] sm:$0xff]
      %v378 = vld [vmem:[%s3 + $0xc8] sm:$0xff]
      %v379 = vld [vmem:[%s3 + $0xd0] sm:$0xff]
      %v380 = vld [vmem:[%s3 + $0xd8] sm:$0xff]
      %v381 = vld [vmem:[%s3 + $0xe0] sm:$0xff]
      %v382 = vld [vmem:[%s3 + $0xe8] sm:$0xff]
      %v383 = vld [vmem:[%s3 + $0xf0] sm:$0xff]
      %v384 = vld [vmem:[%s3 + $0xf8] sm:$0xff]
      %v385 = vld [vmem:[%s3 + $0x100] sm:$0xff]
      %v386 = vld [vmem:[%s3 + $0x108] sm:$0xff]
      %v387 = vld [vmem:[%s3 + $0x110] sm:$0xff]
      %v388 = vld [vmem:[%s3 + $0x118] sm:$0xff]
      %v389 = vld [vmem:[%s3 + $0x120] sm:$0xff]
      %v390 = vld [vmem:[%s3 + $0x128] sm:$0xff]
      %v391 = vld [vmem:[%s3 + $0x130] sm:$0xff]
      %v392 = vld [vmem:[%s3 + $0x138] sm:$0xff]
      %v393 = vld [vmem:[%s3 + $0x140] sm:$0xff]
      %v394 = vld [vmem:[%s3 + $0x148] sm:$0xff]
      %v395 = vld [vmem:[%s3 + $0x150] sm:$0xff]
      %v396 = vld [vmem:[%s3 + $0x158] sm:$0xff]
      %v397 = vld [vmem:[%s3 + $0x160] sm:$0xff]
      %v398 = vld [vmem:[%s3 + $0x168] sm:$0xff]
      %v399 = vld [vmem:[%s3 + $0x170] sm:$0xff]
      %v400 = vld [vmem:[%s3 + $0x178] sm:$0xff]
      %v401 = vld [vmem:[%s3 + $0x180] sm:$0xff]
      %v402 = vld [vmem:[%s3 + $0x188] sm:$0xff]
      %v403 = vld [vmem:[%s3 + $0x190] sm:$0xff]
      %v404 = vld [vmem:[%s3 + $0x198] sm:$0xff]
      %v405 = vld [vmem:[%s3 + $0x1a0] sm:$0xff]
      %v406 = vld [vmem:[%s3 + $0x1a8] sm:$0xff]
      %v407 = vld [vmem:[%s3 + $0x1b0] sm:$0xff]
      %v408 = vld [vmem:[%s3 + $0x1b8] sm:$0xff]
      %v409 = vld [vmem:[%s3 + $0x1c0] sm:$0xff]
      %v410 = vld [vmem:[%s3 + $0x1c8] sm:$0xff]
      %v411 = vld [vmem:[%s3 + $0x1d0] sm:$0xff]
      %v412 = vld [vmem:[%s3 + $0x1d8] sm:$0xff]
      %v413 = vld [vmem:[%s3 + $0x1e0] sm:$0xff]
      %v414 = vld [vmem:[%s3 + $0x1e8] sm:$0xff]
      %v415 = vld [vmem:[%s3 + $0x1f0] sm:$0xff]
      %v416 = vld [vmem:[%s3 + $0x1f8] sm:$0xff]
      %v417 = vld [vmem:[%s2] sm:$0xf]
      %v418 = vld [vmem:[%s4] sm:$0x3]
      %v419 = vld [vmem:[%s219] sm:$0xff]
      %v420 = vld [vmem:[%s219 + $0x8] sm:$0xff]
      %v422 = vperm.slane %v417, 0
      %v423 = vperm.slane %v417, 1
      %v424 = vperm.slane %v417, 2
      %v425 = vperm.slane %v417, 3
      %v432 = vunpack.c.l.b16 %v419
      %v433 = vunpack.c.h.b16 %v419
      %v434 = vunpack.c.l.b16 %v420
      %v435 = vunpack.c.h.b16 %v420
      %v436 = vpack.c.b16 %v432, %v432
      %v437 = vpack.c.b16 %v433, %v433
      %v438 = vpack.c.b16 %v434, %v434
      %v439 = vpack.c.b16 %v435, %v435
      %v572 = vunpack.c.l.b16 %v225
      %v573 = vunpack.c.h.b16 %v225
      %v574 = vunpack.c.l.b16 %v226
      %v575 = vunpack.c.h.b16 %v226
      %v576 = vunpack.c.l.b16 %v227
      %v577 = vunpack.c.h.b16 %v227
      %v578 = vunpack.c.l.b16 %v228
      %v579 = vunpack.c.h.b16 %v228
      %v580 = vunpack.c.l.b16 %v229
      %v581 = vunpack.c.h.b16 %v229
      %v582 = vunpack.c.l.b16 %v230
      %v583 = vunpack.c.h.b16 %v230
      %v584 = vunpack.c.l.b16 %v231
      %v585 = vunpack.c.h.b16 %v231
      %v586 = vunpack.c.l.b16 %v232
      %v587 = vunpack.c.h.b16 %v232
      %v588 = vunpack.c.l.b16 %v233
      %v589 = vunpack.c.h.b16 %v233
      %v590 = vunpack.c.l.b16 %v234
      %v591 = vunpack.c.h.b16 %v234
      %v592 = vunpack.c.l.b16 %v235
      %v593 = vunpack.c.h.b16 %v235
      %v594 = vunpack.c.l.b16 %v236
      %v595 = vunpack.c.h.b16 %v236
      %v596 = vunpack.c.l.b16 %v237
      %v597 = vunpack.c.h.b16 %v237
      %v598 = vunpack.c.l.b16 %v238
      %v599 = vunpack.c.h.b16 %v238
      %v600 = vunpack.c.l.b16 %v239
      %v601 = vunpack.c.h.b16 %v239
      %v602 = vunpack.c.l.b16 %v240
      %v603 = vunpack.c.h.b16 %v240
      %v604 = vunpack.c.l.b16 %v241
      %v605 = vunpack.c.h.b16 %v241
      %v606 = vunpack.c.l.b16 %v242
      %v607 = vunpack.c.h.b16 %v242
      %v608 = vunpack.c.l.b16 %v243
      %v609 = vunpack.c.h.b16 %v243
      %v610 = vunpack.c.l.b16 %v244
      %v611 = vunpack.c.h.b16 %v244
      %v612 = vunpack.c.l.b16 %v245
      %v613 = vunpack.c.h.b16 %v245
      %v614 = vunpack.c.l.b16 %v246
      %v615 = vunpack.c.h.b16 %v246
      %v616 = vunpack.c.l.b16 %v247
      %v617 = vunpack.c.h.b16 %v247
      %v618 = vunpack.c.l.b16 %v248
      %v619 = vunpack.c.h.b16 %v248
      %v620 = vunpack.c.l.b16 %v249
      %v621 = vunpack.c.h.b16 %v249
      %v622 = vunpack.c.l.b16 %v250
      %v623 = vunpack.c.h.b16 %v250
      %v624 = vunpack.c.l.b16 %v251
      %v625 = vunpack.c.h.b16 %v251
      %v626 = vunpack.c.l.b16 %v252
      %v627 = vunpack.c.h.b16 %v252
      %v628 = vunpack.c.l.b16 %v253
      %v629 = vunpack.c.h.b16 %v253
      %v630 = vunpack.c.l.b16 %v254
      %v631 = vunpack.c.h.b16 %v254
      %v632 = vunpack.c.l.b16 %v255
      %v633 = vunpack.c.h.b16 %v255
      %v634 = vunpack.c.l.b16 %v256
      %v635 = vunpack.c.h.b16 %v256
      %v636 = vunpack.c.l.b16 %v257
      %v637 = vunpack.c.h.b16 %v257
      %v638 = vunpack.c.l.b16 %v258
      %v639 = vunpack.c.h.b16 %v258
      %v640 = vunpack.c.l.b16 %v259
      %v641 = vunpack.c.h.b16 %v259
      %v642 = vunpack.c.l.b16 %v260
      %v643 = vunpack.c.h.b16 %v260
      %v644 = vunpack.c.l.b16 %v261
      %v645 = vunpack.c.h.b16 %v261
      %v646 = vunpack.c.l.b16 %v262
      %v647 = vunpack.c.h.b16 %v262
      %v648 = vunpack.c.l.b16 %v263
      %v649 = vunpack.c.h.b16 %v263
      %v650 = vunpack.c.l.b16 %v264
      %v651 = vunpack.c.h.b16 %v264
      %v652 = vunpack.c.l.b16 %v265
      %v653 = vunpack.c.h.b16 %v265
      %v654 = vunpack.c.l.b16 %v266
      %v655 = vunpack.c.h.b16 %v266
      %v656 = vunpack.c.l.b16 %v267
      %v657 = vunpack.c.h.b16 %v267
      %v658 = vunpack.c.l.b16 %v268
      %v659 = vunpack.c.h.b16 %v268
      %v660 = vunpack.c.l.b16 %v269
      %v661 = vunpack.c.h.b16 %v269
      %v662 = vunpack.c.l.b16 %v270
      %v663 = vunpack.c.h.b16 %v270
      %v664 = vunpack.c.l.b16 %v271
      %v665 = vunpack.c.h.b16 %v271
      %v666 = vunpack.c.l.b16 %v272
      %v667 = vunpack.c.h.b16 %v272
      %v668 = vunpack.c.l.b16 %v273
      %v669 = vunpack.c.h.b16 %v273
      %v670 = vunpack.c.l.b16 %v274
      %v671 = vunpack.c.h.b16 %v274
      %v672 = vunpack.c.l.b16 %v275
      %v673 = vunpack.c.h.b16 %v275
      %v674 = vunpack.c.l.b16 %v276
      %v675 = vunpack.c.h.b16 %v276
      %v676 = vunpack.c.l.b16 %v277
      %v677 = vunpack.c.h.b16 %v277
      %v678 = vunpack.c.l.b16 %v278
      %v679 = vunpack.c.h.b16 %v278
      %v680 = vunpack.c.l.b16 %v279
      %v681 = vunpack.c.h.b16 %v279
      %v682 = vunpack.c.l.b16 %v280
      %v683 = vunpack.c.h.b16 %v280
      %v684 = vunpack.c.l.b16 %v281
      %v685 = vunpack.c.h.b16 %v281
      %v686 = vunpack.c.l.b16 %v282
      %v687 = vunpack.c.h.b16 %v282
      %v688 = vunpack.c.l.b16 %v283
      %v689 = vunpack.c.h.b16 %v283
      %v690 = vunpack.c.l.b16 %v284
      %v691 = vunpack.c.h.b16 %v284
      %v692 = vunpack.c.l.b16 %v285
      %v693 = vunpack.c.h.b16 %v285
      %v694 = vunpack.c.l.b16 %v286
      %v695 = vunpack.c.h.b16 %v286
      %v696 = vunpack.c.l.b16 %v287
      %v697 = vunpack.c.h.b16 %v287
      %v698 = vunpack.c.l.b16 %v288
      %v699 = vunpack.c.h.b16 %v288
      %v700 = vunpack.c.l.b16 %v289
      %v701 = vunpack.c.h.b16 %v289
      %v702 = vunpack.c.l.b16 %v290
      %v703 = vunpack.c.h.b16 %v290
      %v704 = vunpack.c.l.b16 %v291
      %v705 = vunpack.c.h.b16 %v291
      %v706 = vunpack.c.l.b16 %v292
      %v707 = vunpack.c.h.b16 %v292
      %v708 = vunpack.c.l.b16 %v293
      %v709 = vunpack.c.h.b16 %v293
      %v710 = vunpack.c.l.b16 %v294
      %v711 = vunpack.c.h.b16 %v294
      %v712 = vunpack.c.l.b16 %v295
      %v713 = vunpack.c.h.b16 %v295
      %v714 = vunpack.c.l.b16 %v296
      %v715 = vunpack.c.h.b16 %v296
      %v716 = vunpack.c.l.b16 %v297
      %v717 = vunpack.c.h.b16 %v297
      %v718 = vunpack.c.l.b16 %v298
      %v719 = vunpack.c.h.b16 %v298
      %v720 = vunpack.c.l.b16 %v299
      %v721 = vunpack.c.h.b16 %v299
      %v722 = vunpack.c.l.b16 %v300
      %v723 = vunpack.c.h.b16 %v300
      %v724 = vunpack.c.l.b16 %v301
      %v725 = vunpack.c.h.b16 %v301
      %v726 = vunpack.c.l.b16 %v302
      %v727 = vunpack.c.h.b16 %v302
      %v728 = vunpack.c.l.b16 %v303
      %v729 = vunpack.c.h.b16 %v303
      %v730 = vunpack.c.l.b16 %v304
      %v731 = vunpack.c.h.b16 %v304
      %v732 = vunpack.c.l.b16 %v305
      %v733 = vunpack.c.h.b16 %v305
      %v734 = vunpack.c.l.b16 %v306
      %v735 = vunpack.c.h.b16 %v306
      %v736 = vunpack.c.l.b16 %v307
      %v737 = vunpack.c.h.b16 %v307
      %v738 = vunpack.c.l.b16 %v308
      %v739 = vunpack.c.h.b16 %v308
      %v740 = vunpack.c.l.b16 %v309
      %v741 = vunpack.c.h.b16 %v309
      %v742 = vunpack.c.l.b16 %v310
      %v743 = vunpack.c.h.b16 %v310
      %v744 = vunpack.c.l.b16 %v311
      %v745 = vunpack.c.h.b16 %v311
      %v746 = vunpack.c.l.b16 %v312
      %v747 = vunpack.c.h.b16 %v312
      %v748 = vunpack.c.l.b16 %v313
      %v749 = vunpack.c.h.b16 %v313
      %v750 = vunpack.c.l.b16 %v314
      %v751 = vunpack.c.h.b16 %v314
      %v752 = vunpack.c.l.b16 %v315
      %v753 = vunpack.c.h.b16 %v315
      %v754 = vunpack.c.l.b16 %v316
      %v755 = vunpack.c.h.b16 %v316
      %v756 = vunpack.c.l.b16 %v317
      %v757 = vunpack.c.h.b16 %v317
      %v758 = vunpack.c.l.b16 %v318
      %v759 = vunpack.c.h.b16 %v318
      %v760 = vunpack.c.l.b16 %v319
      %v761 = vunpack.c.h.b16 %v319
      %v762 = vunpack.c.l.b16 %v320
      %v763 = vunpack.c.h.b16 %v320
      %v764 = vunpack.c.l.b16 %v321
      %v765 = vunpack.c.h.b16 %v321
      %v766 = vunpack.c.l.b16 %v322
      %v767 = vunpack.c.h.b16 %v322
      %v768 = vunpack.c.l.b16 %v323
      %v769 = vunpack.c.h.b16 %v323
      %v770 = vunpack.c.l.b16 %v324
      %v771 = vunpack.c.h.b16 %v324
      %v772 = vunpack.c.l.b16 %v325
      %v773 = vunpack.c.h.b16 %v325
      %v774 = vunpack.c.l.b16 %v326
      %v775 = vunpack.c.h.b16 %v326
      %v776 = vunpack.c.l.b16 %v327
      %v777 = vunpack.c.h.b16 %v327
      %v778 = vunpack.c.l.b16 %v328
      %v779 = vunpack.c.h.b16 %v328
      %v780 = vunpack.c.l.b16 %v329
      %v781 = vunpack.c.h.b16 %v329
      %v782 = vunpack.c.l.b16 %v330
      %v783 = vunpack.c.h.b16 %v330
      %v784 = vunpack.c.l.b16 %v331
      %v785 = vunpack.c.h.b16 %v331
      %v786 = vunpack.c.l.b16 %v332
      %v787 = vunpack.c.h.b16 %v332
      %v788 = vunpack.c.l.b16 %v333
      %v789 = vunpack.c.h.b16 %v333
      %v790 = vunpack.c.l.b16 %v334
      %v791 = vunpack.c.h.b16 %v334
      %v792 = vunpack.c.l.b16 %v335
      %v793 = vunpack.c.h.b16 %v335
      %v794 = vunpack.c.l.b16 %v336
      %v795 = vunpack.c.h.b16 %v336
      %v796 = vunpack.c.l.b16 %v337
      %v797 = vunpack.c.h.b16 %v337
      %v798 = vunpack.c.l.b16 %v338
      %v799 = vunpack.c.h.b16 %v338
      %v800 = vunpack.c.l.b16 %v339
      %v801 = vunpack.c.h.b16 %v339
      %v802 = vunpack.c.l.b16 %v340
      %v803 = vunpack.c.h.b16 %v340
      %v804 = vunpack.c.l.b16 %v341
      %v805 = vunpack.c.h.b16 %v341
      %v806 = vunpack.c.l.b16 %v342
      %v807 = vunpack.c.h.b16 %v342
      %v808 = vunpack.c.l.b16 %v343
      %v809 = vunpack.c.h.b16 %v343
      %v810 = vunpack.c.l.b16 %v344
      %v811 = vunpack.c.h.b16 %v344
      %v812 = vunpack.c.l.b16 %v345
      %v813 = vunpack.c.h.b16 %v345
      %v814 = vunpack.c.l.b16 %v346
      %v815 = vunpack.c.h.b16 %v346
      %v816 = vunpack.c.l.b16 %v347
      %v817 = vunpack.c.h.b16 %v347
      %v818 = vunpack.c.l.b16 %v348
      %v819 = vunpack.c.h.b16 %v348
      %v820 = vunpack.c.l.b16 %v349
      %v821 = vunpack.c.h.b16 %v349
      %v822 = vunpack.c.l.b16 %v350
      %v823 = vunpack.c.h.b16 %v350
      %v824 = vunpack.c.l.b16 %v351
      %v825 = vunpack.c.h.b16 %v351
      %v826 = vunpack.c.l.b16 %v352
      %v827 = vunpack.c.h.b16 %v352
      %v828 = vpack.c.b16 %v576, %v572
      %v829 = vpack.c.b16 %v577, %v573
      %v830 = vpack.c.b16 %v578, %v574
      %v831 = vpack.c.b16 %v579, %v575
      %v832 = vpack.c.b16 %v584, %v580
      %v833 = vpack.c.b16 %v585, %v581
      %v834 = vpack.c.b16 %v586, %v582
      %v835 = vpack.c.b16 %v587, %v583
      %v836 = vpack.c.b16 %v592, %v588
      %v837 = vpack.c.b16 %v593, %v589
      %v838 = vpack.c.b16 %v594, %v590
      %v839 = vpack.c.b16 %v595, %v591
      %v840 = vpack.c.b16 %v600, %v596
      %v841 = vpack.c.b16 %v601, %v597
      %v842 = vpack.c.b16 %v602, %v598
      %v843 = vpack.c.b16 %v603, %v599
      %v844 = vpack.c.b16 %v608, %v604
      %v845 = vpack.c.b16 %v609, %v605
      %v846 = vpack.c.b16 %v610, %v606
      %v847 = vpack.c.b16 %v611, %v607
      %v848 = vpack.c.b16 %v616, %v612
      %v849 = vpack.c.b16 %v617, %v613
      %v850 = vpack.c.b16 %v618, %v614
      %v851 = vpack.c.b16 %v619, %v615
      %v852 = vpack.c.b16 %v624, %v620
      %v853 = vpack.c.b16 %v625, %v621
      %v854 = vpack.c.b16 %v626, %v622
      %v855 = vpack.c.b16 %v627, %v623
      %v856 = vpack.c.b16 %v632, %v628
      %v857 = vpack.c.b16 %v633, %v629
      %v858 = vpack.c.b16 %v634, %v630
      %v859 = vpack.c.b16 %v635, %v631
      %v860 = vpack.c.b16 %v640, %v636
      %v861 = vpack.c.b16 %v641, %v637
      %v862 = vpack.c.b16 %v642, %v638
      %v863 = vpack.c.b16 %v643, %v639
      %v864 = vpack.c.b16 %v648, %v644
      %v865 = vpack.c.b16 %v649, %v645
      %v866 = vpack.c.b16 %v650, %v646
      %v867 = vpack.c.b16 %v651, %v647
      %v868 = vpack.c.b16 %v656, %v652
      %v869 = vpack.c.b16 %v657, %v653
      %v870 = vpack.c.b16 %v658, %v654
      %v871 = vpack.c.b16 %v659, %v655
      %v872 = vpack.c.b16 %v664, %v660
      %v873 = vpack.c.b16 %v665, %v661
      %v874 = vpack.c.b16 %v666, %v662
      %v875 = vpack.c.b16 %v667, %v663
      %v876 = vpack.c.b16 %v672, %v668
      %v877 = vpack.c.b16 %v673, %v669
      %v878 = vpack.c.b16 %v674, %v670
      %v879 = vpack.c.b16 %v675, %v671
      %v880 = vpack.c.b16 %v680, %v676
      %v881 = vpack.c.b16 %v681, %v677
      %v882 = vpack.c.b16 %v682, %v678
      %v883 = vpack.c.b16 %v683, %v679
      %v884 = vpack.c.b16 %v688, %v684
      %v885 = vpack.c.b16 %v689, %v685
      %v886 = vpack.c.b16 %v690, %v686
      %v887 = vpack.c.b16 %v691, %v687
      %v888 = vpack.c.b16 %v696, %v692
      %v889 = vpack.c.b16 %v697, %v693
      %v890 = vpack.c.b16 %v698, %v694
      %v891 = vpack.c.b16 %v699, %v695
      %v892 = vpack.c.b16 %v704, %v700
      %v893 = vpack.c.b16 %v705, %v701
      %v894 = vpack.c.b16 %v706, %v702
      %v895 = vpack.c.b16 %v707, %v703
      %v896 = vpack.c.b16 %v712, %v708
      %v897 = vpack.c.b16 %v713, %v709
      %v898 = vpack.c.b16 %v714, %v710
      %v899 = vpack.c.b16 %v715, %v711
      %v900 = vpack.c.b16 %v720, %v716
      %v901 = vpack.c.b16 %v721, %v717
      %v902 = vpack.c.b16 %v722, %v718
      %v903 = vpack.c.b16 %v723, %v719
      %v904 = vpack.c.b16 %v728, %v724
      %v905 = vpack.c.b16 %v729, %v725
      %v906 = vpack.c.b16 %v730, %v726
      %v907 = vpack.c.b16 %v731, %v727
      %v908 = vpack.c.b16 %v736, %v732
      %v909 = vpack.c.b16 %v737, %v733
      %v910 = vpack.c.b16 %v738, %v734
      %v911 = vpack.c.b16 %v739, %v735
      %v912 = vpack.c.b16 %v744, %v740
      %v913 = vpack.c.b16 %v745, %v741
      %v914 = vpack.c.b16 %v746, %v742
      %v915 = vpack.c.b16 %v747, %v743
      %v916 = vpack.c.b16 %v752, %v748
      %v917 = vpack.c.b16 %v753, %v749
      %v918 = vpack.c.b16 %v754, %v750
      %v919 = vpack.c.b16 %v755, %v751
      %v920 = vpack.c.b16 %v760, %v756
      %v921 = vpack.c.b16 %v761, %v757
      %v922 = vpack.c.b16 %v762, %v758
      %v923 = vpack.c.b16 %v763, %v759
      %v924 = vpack.c.b16 %v768, %v764
      %v925 = vpack.c.b16 %v769, %v765
      %v926 = vpack.c.b16 %v770, %v766
      %v927 = vpack.c.b16 %v771, %v767
      %v928 = vpack.c.b16 %v776, %v772
      %v929 = vpack.c.b16 %v777, %v773
      %v930 = vpack.c.b16 %v778, %v774
      %v931 = vpack.c.b16 %v779, %v775
      %v932 = vpack.c.b16 %v784, %v780
      %v933 = vpack.c.b16 %v785, %v781
      %v934 = vpack.c.b16 %v786, %v782
      %v935 = vpack.c.b16 %v787, %v783
      %v936 = vpack.c.b16 %v792, %v788
      %v937 = vpack.c.b16 %v793, %v789
      %v938 = vpack.c.b16 %v794, %v790
      %v939 = vpack.c.b16 %v795, %v791
      %v940 = vpack.c.b16 %v800, %v796
      %v941 = vpack.c.b16 %v801, %v797
      %v942 = vpack.c.b16 %v802, %v798
      %v943 = vpack.c.b16 %v803, %v799
      %v944 = vpack.c.b16 %v808, %v804
      %v945 = vpack.c.b16 %v809, %v805
      %v946 = vpack.c.b16 %v810, %v806
      %v947 = vpack.c.b16 %v811, %v807
      %v948 = vpack.c.b16 %v816, %v812
      %v949 = vpack.c.b16 %v817, %v813
      %v950 = vpack.c.b16 %v818, %v814
      %v951 = vpack.c.b16 %v819, %v815
      %v952 = vpack.c.b16 %v824, %v820
      %v953 = vpack.c.b16 %v825, %v821
      %v954 = vpack.c.b16 %v826, %v822
      %v955 = vpack.c.b16 %v827, %v823
      %1084 = vmatpush.bf16.msra.mxu0 %v856
      %1085 = vmatpush.bf16.msra.mxu0 %v852
      %1086 = vmatpush.bf16.msra.mxu0 %v848
      %1087 = vmatpush.bf16.msra.mxu0 %v844
      %1088 = vmatpush.bf16.msra.mxu0 %v840
      %1089 = vmatpush.bf16.msra.mxu0 %v836
      %1090 = vmatpush.bf16.msra.mxu0 %v832
      %1091 = vmatpush.bf16.msra.mxu0 %v828
      %1092 = vmatmul.bf16.gmra.mxu0 %v436
      %v1093 = vpop.f32.mrf.mxu0
      %v1094 = vadd.f32 %v422, %v1093
      %v1095 = vpop.f32.mrf.mxu0
      %1096 = vdwg.mxu0
      %1097 = vmatpush.bf16.msra.mxu0 %v888
      %1098 = vmatpush.bf16.msra.mxu0 %v884
      %1099 = vmatpush.bf16.msra.mxu0 %v880
      %1100 = vmatpush.bf16.msra.mxu0 %v876
      %1101 = vmatpush.bf16.msra.mxu0 %v872
      %1102 = vmatpush.bf16.msra.mxu0 %v868
      %1103 = vmatpush.bf16.msra.mxu0 %v864
      %1104 = vmatpush.bf16.msra.mxu0 %v860
      %1105 = vmatmul.bf16.gmra.mxu0 %v437
      %v1106 = vpop.f32.mrf.mxu0
      %v1107 = vadd.f32 %v1094, %v1106
      %v1108 = vpop.f32.mrf.mxu0
      %1109 = vdwg.mxu0
      %1110 = vmatpush.bf16.msra.mxu0 %v920
      %1111 = vmatpush.bf16.msra.mxu0 %v916
      %1112 = vmatpush.bf16.msra.mxu0 %v912
      %1113 = vmatpush.bf16.msra.mxu0 %v908
      %1114 = vmatpush.bf16.msra.mxu0 %v904
      %1115 = vmatpush.bf16.msra.mxu0 %v900
      %1116 = vmatpush.bf16.msra.mxu0 %v896
      %1117 = vmatpush.bf16.msra.mxu0 %v892
      %1118 = vmatmul.bf16.gmra.mxu0 %v438
      %v1119 = vpop.f32.mrf.mxu0
      %v1120 = vadd.f32 %v1107, %v1119
      %v1121 = vpop.f32.mrf.mxu0
      %1122 = vdwg.mxu0
      %1123 = vmatpush.bf16.msra.mxu0 %v952
      %1124 = vmatpush.bf16.msra.mxu0 %v948
      %1125 = vmatpush.bf16.msra.mxu0 %v944
      %1126 = vmatpush.bf16.msra.mxu0 %v940
      %1127 = vmatpush.bf16.msra.mxu0 %v936
      %1128 = vmatpush.bf16.msra.mxu0 %v932
      %1129 = vmatpush.bf16.msra.mxu0 %v928
      %1130 = vmatpush.bf16.msra.mxu0 %v924
      %1131 = vmatmul.bf16.gmra.mxu0 %v439
      %v1132 = vpop.f32.mrf.mxu0
      %v1133 = vadd.f32 %v1120, %v1132
      %v1134 = vpop.f32.mrf.mxu0
      %1135 = vdwg.mxu0
      %1136 = vmatpush.bf16.msra.mxu0 %v857
      %1137 = vmatpush.bf16.msra.mxu0 %v853
      %1138 = vmatpush.bf16.msra.mxu0 %v849
      %1139 = vmatpush.bf16.msra.mxu0 %v845
      %1140 = vmatpush.bf16.msra.mxu0 %v841
      %1141 = vmatpush.bf16.msra.mxu0 %v837
      %1142 = vmatpush.bf16.msra.mxu0 %v833
      %1143 = vmatpush.bf16.msra.mxu0 %v829
      %1144 = vmatmul.bf16.gmra.mxu0 %v436
      %v1145 = vpop.f32.mrf.mxu0
      %v1146 = vadd.f32 %v423, %v1145
      %v1147 = vpop.f32.mrf.mxu0
      %1148 = vdwg.mxu0
      %1149 = vmatpush.bf16.msra.mxu0 %v889
      %1150 = vmatpush.bf16.msra.mxu0 %v885
      %1151 = vmatpush.bf16.msra.mxu0 %v881
      %1152 = vmatpush.bf16.msra.mxu0 %v877
      %1153 = vmatpush.bf16.msra.mxu0 %v873
      %1154 = vmatpush.bf16.msra.mxu0 %v869
      %1155 = vmatpush.bf16.msra.mxu0 %v865
      %1156 = vmatpush.bf16.msra.mxu0 %v861
      %1157 = vmatmul.bf16.gmra.mxu0 %v437
      %v1158 = vpop.f32.mrf.mxu0
      %v1159 = vadd.f32 %v1146, %v1158
      %v1160 = vpop.f32.mrf.mxu0
      %1161 = vdwg.mxu0
      %1162 = vmatpush.bf16.msra.mxu0 %v921
      %1163 = vmatpush.bf16.msra.mxu0 %v917
      %1164 = vmatpush.bf16.msra.mxu0 %v913
      %1165 = vmatpush.bf16.msra.mxu0 %v909
      %1166 = vmatpush.bf16.msra.mxu0 %v905
      %1167 = vmatpush.bf16.msra.mxu0 %v901
      %1168 = vmatpush.bf16.msra.mxu0 %v897
      %1169 = vmatpush.bf16.msra.mxu0 %v893
      %1170 = vmatmul.bf16.gmra.mxu0 %v438
      %v1171 = vpop.f32.mrf.mxu0
      %v1172 = vadd.f32 %v1159, %v1171
      %v1173 = vpop.f32.mrf.mxu0
      %1174 = vdwg.mxu0
      %1175 = vmatpush.bf16.msra.mxu0 %v953
      %1176 = vmatpush.bf16.msra.mxu0 %v949
      %1177 = vmatpush.bf16.msra.mxu0 %v945
      %1178 = vmatpush.bf16.msra.mxu0 %v941
      %1179 = vmatpush.bf16.msra.mxu0 %v937
      %1180 = vmatpush.bf16.msra.mxu0 %v933
      %1181 = vmatpush.bf16.msra.mxu0 %v929
      %1182 = vmatpush.bf16.msra.mxu0 %v925
      %1183 = vmatmul.bf16.gmra.mxu0 %v439
      %v1184 = vpop.f32.mrf.mxu0
      %v1185 = vadd.f32 %v1172, %v1184
      %v1186 = vpop.f32.mrf.mxu0
      %1187 = vdwg.mxu0
      %1188 = vmatpush.bf16.msra.mxu0 %v858
      %1189 = vmatpush.bf16.msra.mxu0 %v854
      %1190 = vmatpush.bf16.msra.mxu0 %v850
      %1191 = vmatpush.bf16.msra.mxu0 %v846
      %1192 = vmatpush.bf16.msra.mxu0 %v842
      %1193 = vmatpush.bf16.msra.mxu0 %v838
      %1194 = vmatpush.bf16.msra.mxu0 %v834
      %1195 = vmatpush.bf16.msra.mxu0 %v830
      %1196 = vmatmul.bf16.gmra.mxu0 %v436
      %v1197 = vpop.f32.mrf.mxu0
      %v1198 = vadd.f32 %v424, %v1197
      %v1199 = vpop.f32.mrf.mxu0
      %1200 = vdwg.mxu0
      %1201 = vmatpush.bf16.msra.mxu0 %v890
      %1202 = vmatpush.bf16.msra.mxu0 %v886
      %1203 = vmatpush.bf16.msra.mxu0 %v882
      %1204 = vmatpush.bf16.msra.mxu0 %v878
      %1205 = vmatpush.bf16.msra.mxu0 %v874
      %1206 = vmatpush.bf16.msra.mxu0 %v870
      %1207 = vmatpush.bf16.msra.mxu0 %v866
      %1208 = vmatpush.bf16.msra.mxu0 %v862
      %1209 = vmatmul.bf16.gmra.mxu0 %v437
      %v1210 = vpop.f32.mrf.mxu0
      %v1211 = vadd.f32 %v1198, %v1210
      %v1212 = vpop.f32.mrf.mxu0
      %1213 = vdwg.mxu0
      %1214 = vmatpush.bf16.msra.mxu0 %v922
      %1215 = vmatpush.bf16.msra.mxu0 %v918
      %1216 = vmatpush.bf16.msra.mxu0 %v914
      %1217 = vmatpush.bf16.msra.mxu0 %v910
      %1218 = vmatpush.bf16.msra.mxu0 %v906
      %1219 = vmatpush.bf16.msra.mxu0 %v902
      %1220 = vmatpush.bf16.msra.mxu0 %v898
      %1221 = vmatpush.bf16.msra.mxu0 %v894
      %1222 = vmatmul.bf16.gmra.mxu0 %v438
      %v1223 = vpop.f32.mrf.mxu0
      %v1224 = vadd.f32 %v1211, %v1223
      %v1225 = vpop.f32.mrf.mxu0
      %1226 = vdwg.mxu0
      %1227 = vmatpush.bf16.msra.mxu0 %v954
      %1228 = vmatpush.bf16.msra.mxu0 %v950
      %1229 = vmatpush.bf16.msra.mxu0 %v946
      %1230 = vmatpush.bf16.msra.mxu0 %v942
      %1231 = vmatpush.bf16.msra.mxu0 %v938
      %1232 = vmatpush.bf16.msra.mxu0 %v934
      %1233 = vmatpush.bf16.msra.mxu0 %v930
      %1234 = vmatpush.bf16.msra.mxu0 %v926
      %1235 = vmatmul.bf16.gmra.mxu0 %v439
      %v1236 = vpop.f32.mrf.mxu0
      %v1237 = vadd.f32 %v1224, %v1236
      %v1238 = vpop.f32.mrf.mxu0
      %1239 = vdwg.mxu0
      %1240 = vmatpush.bf16.msra.mxu0 %v859
      %1241 = vmatpush.bf16.msra.mxu0 %v855
      %1242 = vmatpush.bf16.msra.mxu0 %v851
      %1243 = vmatpush.bf16.msra.mxu0 %v847
      %1244 = vmatpush.bf16.msra.mxu0 %v843
      %1245 = vmatpush.bf16.msra.mxu0 %v839
      %1246 = vmatpush.bf16.msra.mxu0 %v835
      %1247 = vmatpush.bf16.msra.mxu0 %v831
      %1248 = vmatmul.bf16.gmra.mxu0 %v436
      %v1249 = vpop.f32.mrf.mxu0
      %v1250 = vadd.f32 %v425, %v1249
      %v1251 = vpop.f32.mrf.mxu0
      %1252 = vdwg.mxu0
      %1253 = vmatpush.bf16.msra.mxu0 %v891
      %1254 = vmatpush.bf16.msra.mxu0 %v887
      %1255 = vmatpush.bf16.msra.mxu0 %v883
      %1256 = vmatpush.bf16.msra.mxu0 %v879
      %1257 = vmatpush.bf16.msra.mxu0 %v875
      %1258 = vmatpush.bf16.msra.mxu0 %v871
      %1259 = vmatpush.bf16.msra.mxu0 %v867
      %1260 = vmatpush.bf16.msra.mxu0 %v863
      %1261 = vmatmul.bf16.gmra.mxu0 %v437
      %v1262 = vpop.f32.mrf.mxu0
      %v1263 = vadd.f32 %v1250, %v1262
      %v1264 = vpop.f32.mrf.mxu0
      %1265 = vdwg.mxu0
      %1266 = vmatpush.bf16.msra.mxu0 %v923
      %1267 = vmatpush.bf16.msra.mxu0 %v919
      %1268 = vmatpush.bf16.msra.mxu0 %v915
      %1269 = vmatpush.bf16.msra.mxu0 %v911
      %1270 = vmatpush.bf16.msra.mxu0 %v907
      %1271 = vmatpush.bf16.msra.mxu0 %v903
      %1272 = vmatpush.bf16.msra.mxu0 %v899
      %1273 = vmatpush.bf16.msra.mxu0 %v895
      %1274 = vmatmul.bf16.gmra.mxu0 %v438
      %v1275 = vpop.f32.mrf.mxu0
      %v1276 = vadd.f32 %v1263, %v1275
      %v1277 = vpop.f32.mrf.mxu0
      %1278 = vdwg.mxu0
      %1279 = vmatpush.bf16.msra.mxu0 %v955
      %1280 = vmatpush.bf16.msra.mxu0 %v951
      %1281 = vmatpush.bf16.msra.mxu0 %v947
      %1282 = vmatpush.bf16.msra.mxu0 %v943
      %1283 = vmatpush.bf16.msra.mxu0 %v939
      %1284 = vmatpush.bf16.msra.mxu0 %v935
      %1285 = vmatpush.bf16.msra.mxu0 %v931
      %1286 = vmatpush.bf16.msra.mxu0 %v927
      %1287 = vmatmul.bf16.gmra.mxu0 %v439
      %v1288 = vpop.f32.mrf.mxu0
      %v1289 = vadd.f32 %v1276, %v1288
      %v1290 = vpop.f32.mrf.mxu0
      %1291 = vdwg.mxu0
      %v1292 = vmax.f32 %v1133, 0.0
      %v1293 = vmax.f32 %v1185, 0.0
      %v1294 = vmax.f32 %v1237, 0.0
      %v1295 = vmax.f32 %v1289, 0.0
      %v1296 = vpack.c.bf16 %v1292, %v1292
      %v1297 = vpack.c.bf16 %v1293, %v1293
      %v1298 = vpack.c.bf16 %v1294, %v1294
      %v1299 = vpack.c.bf16 %v1295, %v1295
      %v1301 = vperm.slane %v418, 0
      %v1302 = vperm.slane %v418, 1
      %v1369 = vunpack.c.l.b16 %v353
      %v1370 = vunpack.c.h.b16 %v353
      %v1371 = vunpack.c.l.b16 %v354
      %v1372 = vunpack.c.h.b16 %v354
      %v1373 = vunpack.c.l.b16 %v355
      %v1374 = vunpack.c.h.b16 %v355
      %v1375 = vunpack.c.l.b16 %v356
      %v1376 = vunpack.c.h.b16 %v356
      %v1377 = vunpack.c.l.b16 %v357
      %v1378 = vunpack.c.h.b16 %v357
      %v1379 = vunpack.c.l.b16 %v358
      %v1380 = vunpack.c.h.b16 %v358
      %v1381 = vunpack.c.l.b16 %v359
      %v1382 = vunpack.c.h.b16 %v359
      %v1383 = vunpack.c.l.b16 %v360
      %v1384 = vunpack.c.h.b16 %v360
      %v1385 = vunpack.c.l.b16 %v361
      %v1386 = vunpack.c.h.b16 %v361
      %v1387 = vunpack.c.l.b16 %v362
      %v1388 = vunpack.c.h.b16 %v362
      %v1389 = vunpack.c.l.b16 %v363
      %v1390 = vunpack.c.h.b16 %v363
      %v1391 = vunpack.c.l.b16 %v364
      %v1392 = vunpack.c.h.b16 %v364
      %v1393 = vunpack.c.l.b16 %v365
      %v1394 = vunpack.c.h.b16 %v365
      %v1395 = vunpack.c.l.b16 %v366
      %v1396 = vunpack.c.h.b16 %v366
      %v1397 = vunpack.c.l.b16 %v367
      %v1398 = vunpack.c.h.b16 %v367
      %v1399 = vunpack.c.l.b16 %v368
      %v1400 = vunpack.c.h.b16 %v368
      %v1401 = vunpack.c.l.b16 %v369
      %v1402 = vunpack.c.h.b16 %v369
      %v1403 = vunpack.c.l.b16 %v370
      %v1404 = vunpack.c.h.b16 %v370
      %v1405 = vunpack.c.l.b16 %v371
      %v1406 = vunpack.c.h.b16 %v371
      %v1407 = vunpack.c.l.b16 %v372
      %v1408 = vunpack.c.h.b16 %v372
      %v1409 = vunpack.c.l.b16 %v373
      %v1410 = vunpack.c.h.b16 %v373
      %v1411 = vunpack.c.l.b16 %v374
      %v1412 = vunpack.c.h.b16 %v374
      %v1413 = vunpack.c.l.b16 %v375
      %v1414 = vunpack.c.h.b16 %v375
      %v1415 = vunpack.c.l.b16 %v376
      %v1416 = vunpack.c.h.b16 %v376
      %v1417 = vunpack.c.l.b16 %v377
      %v1418 = vunpack.c.h.b16 %v377
      %v1419 = vunpack.c.l.b16 %v378
      %v1420 = vunpack.c.h.b16 %v378
      %v1421 = vunpack.c.l.b16 %v379
      %v1422 = vunpack.c.h.b16 %v379
      %v1423 = vunpack.c.l.b16 %v380
      %v1424 = vunpack.c.h.b16 %v380
      %v1425 = vunpack.c.l.b16 %v381
      %v1426 = vunpack.c.h.b16 %v381
      %v1427 = vunpack.c.l.b16 %v382
      %v1428 = vunpack.c.h.b16 %v382
      %v1429 = vunpack.c.l.b16 %v383
      %v1430 = vunpack.c.h.b16 %v383
      %v1431 = vunpack.c.l.b16 %v384
      %v1432 = vunpack.c.h.b16 %v384
      %v1433 = vunpack.c.l.b16 %v385
      %v1434 = vunpack.c.h.b16 %v385
      %v1435 = vunpack.c.l.b16 %v386
      %v1436 = vunpack.c.h.b16 %v386
      %v1437 = vunpack.c.l.b16 %v387
      %v1438 = vunpack.c.h.b16 %v387
      %v1439 = vunpack.c.l.b16 %v388
      %v1440 = vunpack.c.h.b16 %v388
      %v1441 = vunpack.c.l.b16 %v389
      %v1442 = vunpack.c.h.b16 %v389
      %v1443 = vunpack.c.l.b16 %v390
      %v1444 = vunpack.c.h.b16 %v390
      %v1445 = vunpack.c.l.b16 %v391
      %v1446 = vunpack.c.h.b16 %v391
      %v1447 = vunpack.c.l.b16 %v392
      %v1448 = vunpack.c.h.b16 %v392
      %v1449 = vunpack.c.l.b16 %v393
      %v1450 = vunpack.c.h.b16 %v393
      %v1451 = vunpack.c.l.b16 %v394
      %v1452 = vunpack.c.h.b16 %v394
      %v1453 = vunpack.c.l.b16 %v395
      %v1454 = vunpack.c.h.b16 %v395
      %v1455 = vunpack.c.l.b16 %v396
      %v1456 = vunpack.c.h.b16 %v396
      %v1457 = vunpack.c.l.b16 %v397
      %v1458 = vunpack.c.h.b16 %v397
      %v1459 = vunpack.c.l.b16 %v398
      %v1460 = vunpack.c.h.b16 %v398
      %v1461 = vunpack.c.l.b16 %v399
      %v1462 = vunpack.c.h.b16 %v399
      %v1463 = vunpack.c.l.b16 %v400
      %v1464 = vunpack.c.h.b16 %v400
      %v1465 = vunpack.c.l.b16 %v401
      %v1466 = vunpack.c.h.b16 %v401
      %v1467 = vunpack.c.l.b16 %v402
      %v1468 = vunpack.c.h.b16 %v402
      %v1469 = vunpack.c.l.b16 %v403
      %v1470 = vunpack.c.h.b16 %v403
      %v1471 = vunpack.c.l.b16 %v404
      %v1472 = vunpack.c.h.b16 %v404
      %v1473 = vunpack.c.l.b16 %v405
      %v1474 = vunpack.c.h.b16 %v405
      %v1475 = vunpack.c.l.b16 %v406
      %v1476 = vunpack.c.h.b16 %v406
      %v1477 = vunpack.c.l.b16 %v407
      %v1478 = vunpack.c.h.b16 %v407
      %v1479 = vunpack.c.l.b16 %v408
      %v1480 = vunpack.c.h.b16 %v408
      %v1481 = vunpack.c.l.b16 %v409
      %v1482 = vunpack.c.h.b16 %v409
      %v1483 = vunpack.c.l.b16 %v410
      %v1484 = vunpack.c.h.b16 %v410
      %v1485 = vunpack.c.l.b16 %v411
      %v1486 = vunpack.c.h.b16 %v411
      %v1487 = vunpack.c.l.b16 %v412
      %v1488 = vunpack.c.h.b16 %v412
      %v1489 = vunpack.c.l.b16 %v413
      %v1490 = vunpack.c.h.b16 %v413
      %v1491 = vunpack.c.l.b16 %v414
      %v1492 = vunpack.c.h.b16 %v414
      %v1493 = vunpack.c.l.b16 %v415
      %v1494 = vunpack.c.h.b16 %v415
      %v1495 = vunpack.c.l.b16 %v416
      %v1496 = vunpack.c.h.b16 %v416
      %v1497 = vpack.c.b16 %v1371, %v1369
      %v1498 = vpack.c.b16 %v1372, %v1370
      %v1499 = vpack.c.b16 %v1375, %v1373
      %v1500 = vpack.c.b16 %v1376, %v1374
      %v1501 = vpack.c.b16 %v1379, %v1377
      %v1502 = vpack.c.b16 %v1380, %v1378
      %v1503 = vpack.c.b16 %v1383, %v1381
      %v1504 = vpack.c.b16 %v1384, %v1382
      %v1505 = vpack.c.b16 %v1387, %v1385
      %v1506 = vpack.c.b16 %v1388, %v1386
      %v1507 = vpack.c.b16 %v1391, %v1389
      %v1508 = vpack.c.b16 %v1392, %v1390
      %v1509 = vpack.c.b16 %v1395, %v1393
      %v1510 = vpack.c.b16 %v1396, %v1394
      %v1511 = vpack.c.b16 %v1399, %v1397
      %v1512 = vpack.c.b16 %v1400, %v1398
      %v1513 = vpack.c.b16 %v1403, %v1401
      %v1514 = vpack.c.b16 %v1404, %v1402
      %v1515 = vpack.c.b16 %v1407, %v1405
      %v1516 = vpack.c.b16 %v1408, %v1406
      %v1517 = vpack.c.b16 %v1411, %v1409
      %v1518 = vpack.c.b16 %v1412, %v1410
      %v1519 = vpack.c.b16 %v1415, %v1413
      %v1520 = vpack.c.b16 %v1416, %v1414
      %v1521 = vpack.c.b16 %v1419, %v1417
      %v1522 = vpack.c.b16 %v1420, %v1418
      %v1523 = vpack.c.b16 %v1423, %v1421
      %v1524 = vpack.c.b16 %v1424, %v1422
      %v1525 = vpack.c.b16 %v1427, %v1425
      %v1526 = vpack.c.b16 %v1428, %v1426
      %v1527 = vpack.c.b16 %v1431, %v1429
      %v1528 = vpack.c.b16 %v1432, %v1430
      %v1529 = vpack.c.b16 %v1435, %v1433
      %v1530 = vpack.c.b16 %v1436, %v1434
      %v1531 = vpack.c.b16 %v1439, %v1437
      %v1532 = vpack.c.b16 %v1440, %v1438
      %v1533 = vpack.c.b16 %v1443, %v1441
      %v1534 = vpack.c.b16 %v1444, %v1442
      %v1535 = vpack.c.b16 %v1447, %v1445
      %v1536 = vpack.c.b16 %v1448, %v1446
      %v1537 = vpack.c.b16 %v1451, %v1449
      %v1538 = vpack.c.b16 %v1452, %v1450
      %v1539 = vpack.c.b16 %v1455, %v1453
      %v1540 = vpack.c.b16 %v1456, %v1454
      %v1541 = vpack.c.b16 %v1459, %v1457
      %v1542 = vpack.c.b16 %v1460, %v1458
      %v1543 = vpack.c.b16 %v1463, %v1461
      %v1544 = vpack.c.b16 %v1464, %v1462
      %v1545 = vpack.c.b16 %v1467, %v1465
      %v1546 = vpack.c.b16 %v1468, %v1466
      %v1547 = vpack.c.b16 %v1471, %v1469
      %v1548 = vpack.c.b16 %v1472, %v1470
      %v1549 = vpack.c.b16 %v1475, %v1473
      %v1550 = vpack.c.b16 %v1476, %v1474
      %v1551 = vpack.c.b16 %v1479, %v1477
      %v1552 = vpack.c.b16 %v1480, %v1478
      %v1553 = vpack.c.b16 %v1483, %v1481
      %v1554 = vpack.c.b16 %v1484, %v1482
      %v1555 = vpack.c.b16 %v1487, %v1485
      %v1556 = vpack.c.b16 %v1488, %v1486
      %v1557 = vpack.c.b16 %v1491, %v1489
      %v1558 = vpack.c.b16 %v1492, %v1490
      %v1559 = vpack.c.b16 %v1495, %v1493
      %v1560 = vpack.c.b16 %v1496, %v1494
      %1625 = vmatpush.bf16.msra.mxu0 %v1511
      %1626 = vmatpush.bf16.msra.mxu0 %v1509
      %1627 = vmatpush.bf16.msra.mxu0 %v1507
      %1628 = vmatpush.bf16.msra.mxu0 %v1505
      %1629 = vmatpush.bf16.msra.mxu0 %v1503
      %1630 = vmatpush.bf16.msra.mxu0 %v1501
      %1631 = vmatpush.bf16.msra.mxu0 %v1499
      %1632 = vmatpush.bf16.msra.mxu0 %v1497
      %1633 = vmatmul.bf16.gmra.mxu0 %v1296
      %v1634 = vpop.f32.mrf.mxu0
      %v1635 = vadd.f32 %v1301, %v1634
      %v1636 = vpop.f32.mrf.mxu0
      %1637 = vdwg.mxu0
      %1638 = vmatpush.bf16.msra.mxu0 %v1527
      %1639 = vmatpush.bf16.msra.mxu0 %v1525
      %1640 = vmatpush.bf16.msra.mxu0 %v1523
      %1641 = vmatpush.bf16.msra.mxu0 %v1521
      %1642 = vmatpush.bf16.msra.mxu0 %v1519
      %1643 = vmatpush.bf16.msra.mxu0 %v1517
      %1644 = vmatpush.bf16.msra.mxu0 %v1515
      %1645 = vmatpush.bf16.msra.mxu0 %v1513
      %1646 = vmatmul.bf16.gmra.mxu0 %v1297
      %v1647 = vpop.f32.mrf.mxu0
      %v1648 = vadd.f32 %v1635, %v1647
      %v1649 = vpop.f32.mrf.mxu0
      %1650 = vdwg.mxu0
      %1651 = vmatpush.bf16.msra.mxu0 %v1543
      %1652 = vmatpush.bf16.msra.mxu0 %v1541
      %1653 = vmatpush.bf16.msra.mxu0 %v1539
      %1654 = vmatpush.bf16.msra.mxu0 %v1537
      %1655 = vmatpush.bf16.msra.mxu0 %v1535
      %1656 = vmatpush.bf16.msra.mxu0 %v1533
      %1657 = vmatpush.bf16.msra.mxu0 %v1531
      %1658 = vmatpush.bf16.msra.mxu0 %v1529
      %1659 = vmatmul.bf16.gmra.mxu0 %v1298
      %v1660 = vpop.f32.mrf.mxu0
      %v1661 = vadd.f32 %v1648, %v1660
      %v1662 = vpop.f32.mrf.mxu0
      %1663 = vdwg.mxu0
      %1664 = vmatpush.bf16.msra.mxu0 %v1559
      %1665 = vmatpush.bf16.msra.mxu0 %v1557
      %1666 = vmatpush.bf16.msra.mxu0 %v1555
      %1667 = vmatpush.bf16.msra.mxu0 %v1553
      %1668 = vmatpush.bf16.msra.mxu0 %v1551
      %1669 = vmatpush.bf16.msra.mxu0 %v1549
      %1670 = vmatpush.bf16.msra.mxu0 %v1547
      %1671 = vmatpush.bf16.msra.mxu0 %v1545
      %1672 = vmatmul.bf16.gmra.mxu0 %v1299
      %v1673 = vpop.f32.mrf.mxu0
      %v1674 = vadd.f32 %v1661, %v1673
      %v1675 = vpop.f32.mrf.mxu0
      %1676 = vdwg.mxu0
      %1677 = vmatpush.bf16.msra.mxu0 %v1512
      %1678 = vmatpush.bf16.msra.mxu0 %v1510
      %1679 = vmatpush.bf16.msra.mxu0 %v1508
      %1680 = vmatpush.bf16.msra.mxu0 %v1506
      %1681 = vmatpush.bf16.msra.mxu0 %v1504
      %1682 = vmatpush.bf16.msra.mxu0 %v1502
      %1683 = vmatpush.bf16.msra.mxu0 %v1500
      %1684 = vmatpush.bf16.msra.mxu0 %v1498
      %1685 = vmatmul.bf16.gmra.mxu0 %v1296
      %v1686 = vpop.f32.mrf.mxu0
      %v1687 = vadd.f32 %v1302, %v1686
      %v1688 = vpop.f32.mrf.mxu0
      %1689 = vdwg.mxu0
      %1690 = vmatpush.bf16.msra.mxu0 %v1528
      %1691 = vmatpush.bf16.msra.mxu0 %v1526
      %1692 = vmatpush.bf16.msra.mxu0 %v1524
      %1693 = vmatpush.bf16.msra.mxu0 %v1522
      %1694 = vmatpush.bf16.msra.mxu0 %v1520
      %1695 = vmatpush.bf16.msra.mxu0 %v1518
      %1696 = vmatpush.bf16.msra.mxu0 %v1516
      %1697 = vmatpush.bf16.msra.mxu0 %v1514
      %1698 = vmatmul.bf16.gmra.mxu0 %v1297
      %v1699 = vpop.f32.mrf.mxu0
      %v1700 = vadd.f32 %v1687, %v1699
      %v1701 = vpop.f32.mrf.mxu0
      %1702 = vdwg.mxu0
      %1703 = vmatpush.bf16.msra.mxu0 %v1544
      %1704 = vmatpush.bf16.msra.mxu0 %v1542
      %1705 = vmatpush.bf16.msra.mxu0 %v1540
      %1706 = vmatpush.bf16.msra.mxu0 %v1538
      %1707 = vmatpush.bf16.msra.mxu0 %v1536
      %1708 = vmatpush.bf16.msra.mxu0 %v1534
      %1709 = vmatpush.bf16.msra.mxu0 %v1532
      %1710 = vmatpush.bf16.msra.mxu0 %v1530
      %1711 = vmatmul.bf16.gmra.mxu0 %v1298
      %v1712 = vpop.f32.mrf.mxu0
      %v1713 = vadd.f32 %v1700, %v1712
      %v1714 = vpop.f32.mrf.mxu0
      %1715 = vdwg.mxu0
      %1716 = vmatpush.bf16.msra.mxu0 %v1560
      %1717 = vmatpush.bf16.msra.mxu0 %v1558
      %1718 = vmatpush.bf16.msra.mxu0 %v1556
      %1719 = vmatpush.bf16.msra.mxu0 %v1554
      %1720 = vmatpush.bf16.msra.mxu0 %v1552
      %1721 = vmatpush.bf16.msra.mxu0 %v1550
      %1722 = vmatpush.bf16.msra.mxu0 %v1548
      %1723 = vmatpush.bf16.msra.mxu0 %v1546
      %1724 = vmatmul.bf16.gmra.mxu0 %v1299
      %v1725 = vpop.f32.mrf.mxu0
      %v1726 = vadd.f32 %v1713, %v1725
      %v1727 = vpop.f32.mrf.mxu0
      %1728 = vdwg.mxu0
      %v1729 = vpack.c.bf16 %v1726, %v1674
      %1730 = vst [vmem:[%s224] sm:$0xff] %v1729
      %p1731 = scmp.lt.s32.totalorder %s16, 2
      %s1732 = scalar_select %p1731, %s16, 2
      %s1733 = smul.addr %s1732, 2
      %s1734 = smul.addr %s1733, 4
      %s1735 = scalar_lea.vmem %s5, %s1734
      // Predicated region
      $region41: #{decoder_forward.1} parent=39 // pred_check
        %p1736 = pneg %p144
      $region42: #{decoder_forward.1} parent=39 // pred_check_branch
        %1738 = sbr.rel (%p1736) target = $region44
      $region43: #{decoder_forward.1} parent=39 // pred_region
        _
      $region44: #{decoder_forward.1} parent=39 // pred_fallthru
        _
    $region40: #{decoder_forward.1} parent=5 // pred_fallthru
      _
    %p1739 = scmp.le.s32.totalorder 2, %s11
    // Predicated region
    $region45: #{decoder_forward.1} parent=5 // pred_check
      %p1740 = pneg %p1739
    $region46: #{decoder_forward.1} parent=5 // pred_check_branch
      %1742 = sbr.rel (%p1740) target = $region48
    $region47: #{decoder_forward.1} parent=5 // pred_region
      %s1743 = ssub.s32 %s11, 2
      // Predicated region
      $region49: #{decoder_forward.1} parent=47 // pred_check
        %p1744 = pneg %p150
      $region50: #{decoder_forward.1} parent=47 // pred_check_branch
        %1746 = sbr.rel (%p1744) target = $region52
      $region51: #{decoder_forward.1} parent=47 // pred_region
        %p1747 = scmp.lt.s32.totalorder %s17, 2
        %s1748 = scalar_select %p1747, %s17, 2
        %s1749 = smul.addr %s1748, 2
        %s1750 = smul.addr %s1749, 4
        %s1751 = scalar_lea.vmem %s5, %s1750
      $region52: #{decoder_forward.1} parent=47 // pred_fallthru
        _
    $region48: #{decoder_forward.1} parent=5 // pred_fallthru
      _
  $region6: #{decoder_forward.1} parent=0 // loop_footer
    %s15 = sadd.s32 1, %s11
  $region7: #{decoder_forward.1} parent=0 // loop_footer_branch
    %10 = sbr.rel target = $region3
  $region8: #{decoder_forward.1} parent=0 // loop_exit
    _

// kernel: decoder_forward.1
$region0: #{decoder_forward.1}
  #allocation0 [shape = 'u32[]', space=smem, size = 0x4, offset = 0x4, fixed_abs, tag = 'smem constant byte address 0x4 - core index']
  #allocation1 [shape = 'u32[72,128]{1,0:T(1,128)}', space=vmem, size = 0x9000, scoped, tag = 'internal scratch']
  %s0 = inlined_call_operand.vmem [shape: bf16[19,512], index: 0, kind: input, shape index: {}]
  %s1 = inlined_call_operand.vmem [shape: bf16[512,512], index: 1, kind: input, shape index: {}]
  %s2 = inlined_call_operand.vmem [shape: f32[1,512], index: 2, kind: input, shape index: {}]
  %s3 = inlined_call_operand.vmem [shape: bf16[512,256], index: 3, kind: input, shape index: {}]
  %s4 = inlined_call_operand.vmem [shape: f32[1,256], index: 4, kind: input, shape index: {}]
  %s5 = inlined_call_operand.vmem [shape: bf16[19,256], index: 5, kind: output, shape index: {}]
  %s6 = sld [smem:[#allocation0]]
  $region53: #{decoder_forward.1} parent=0
    _
  %s8 = ssub.s32 1, %s6
  %s9 = scalar_select 0, %s8, %s6
  loop: start=0, step=1, limit=5
  $region2: #{decoder_forward.1} parent=0 // loop_pre_header
    _
  $region3: #{decoder_forward.1} parent=0 // loop_header
    %s11 = sphi 0, %s15
    %p12 = scmp.ge.s32.totalorder %s11, 5
    %s21 = sphi 0, %s23
    %s24 = sphi 0, %s21
    %s25 = sphi 0, %s24
    %s41 = sphi 0, %s25
    %s45 = sphi 0, %s45
    %s47 = sphi 0, %s45
    %s48 = sphi 0, %s47
    %s62 = sphi 0, %s48
    %s66 = sphi 0, %s66
    %s68 = sphi 0, %s66
    %s69 = sphi 0, %s68
    %s83 = sphi 0, %s69
    %s87 = sphi 0, %s87
    %s89 = sphi 0, %s87
    %s90 = sphi 0, %s89
    %s104 = sphi 0, %s90
    %s108 = sphi 0, %s108
    %s110 = sphi 0, %s108
    %s111 = sphi 0, %s110
    %s125 = sphi 0, %s111
    %s131 = sphi 0, %s133
    %s134 = sphi 0, %s131
    %s135 = sphi 0, %s134
    %s151 = sphi 0, %s135
  $region4: #{decoder_forward.1} parent=0 // loop_header_branch
    %14 = sbr.rel (%p12) target = $region8
  $region5: #{decoder_forward.1} parent=0 // loop_body
    %s16 = ssub.s32 %s11, 1
    %s17 = ssub.s32 %s11, 2
    %s18 = sadd.s32 %s11, 1
    %s19 = ssub.s32 %s11, %s18
    %p20 = scmp.eq.s32.totalorder %s19, 0
    %s22 = sadd.s32 %s21, 1
    %s23 = scalar_select %p20, %s21, %s22
    %p26 = pneg %p20
    %p27 = scmp.eq.s32.totalorder %s11, 2
    %p28 = por %p26, %p27
    %p29 = scmp.ne.s32.totalorder %s21, %s24
    %p30 = scmp.eq.s32.totalorder %s11, 0
    %p31 = por %p29, %p30
    %p32 = scmp.ne.s32.totalorder %s21, %s24
    %p33 = scmp.eq.s32.totalorder %s16, 2
    %p34 = por %p32, %p33
    %p35 = scmp.ne.s32.totalorder %s24, %s25
    %p36 = scmp.eq.s32.totalorder %s16, 0
    %p37 = por %p35, %p36
    %p38 = scmp.ne.s32.totalorder %s24, %s25
    %p39 = scmp.eq.s32.totalorder %s17, 2
    %p40 = por %p38, %p39
    %p42 = scmp.ne.s32.totalorder %s25, %s41
    %p43 = scmp.eq.s32.totalorder %s17, 0
    %p44 = por %p42, %p43
    %s46 = sadd.s32 %s45, 1
    %p49 = scmp.eq.s32.totalorder %s11, 2
    %p50 = scmp.ne.s32.totalorder %s45, %s47
    %p51 = scmp.eq.s32.totalorder %s11, 0
    %p52 = por %p50, %p51
    %p53 = scmp.ne.s32.totalorder %s45, %s47
    %p54 = scmp.eq.s32.totalorder %s16, 2
    %p55 = por %p53, %p54
    %p56 = scmp.ne.s32.totalorder %s47, %s48
    %p57 = scmp.eq.s32.totalorder %s16, 0
    %p58 = por %p56, %p57
    %p59 = scmp.ne.s32.totalorder %s47, %s48
    %p60 = scmp.eq.s32.totalorder %s17, 2
    %p61 = por %p59, %p60
    %p63 = scmp.ne.s32.totalorder %s48, %s62
    %p64 = scmp.eq.s32.totalorder %s17, 0
    %p65 = por %p63, %p64
    %s67 = sadd.s32 %s66, 1
    %p70 = scmp.eq.s32.totalorder %s11, 2
    %p71 = scmp.ne.s32.totalorder %s66, %s68
    %p72 = scmp.eq.s32.totalorder %s11, 0
    %p73 = por %p71, %p72
    %p74 = scmp.ne.s32.totalorder %s66, %s68
    %p75 = scmp.eq.s32.totalorder %s16, 2
    %p76 = por %p74, %p75
    %p77 = scmp.ne.s32.totalorder %s68, %s69
    %p78 = scmp.eq.s32.totalorder %s16, 0
    %p79 = por %p77, %p78
    %p80 = scmp.ne.s32.totalorder %s68, %s69
    %p81 = scmp.eq.s32.totalorder %s17, 2
    %p82 = por %p80, %p81
    %p84 = scmp.ne.s32.totalorder %s69, %s83
    %p85 = scmp.eq.s32.totalorder %s17, 0
    %p86 = por %p84, %p85
    %s88 = sadd.s32 %s87, 1
    %p91 = scmp.eq.s32.totalorder %s11, 2
    %p92 = scmp.ne.s32.totalorder %s87, %s89
    %p93 = scmp.eq.s32.totalorder %s11, 0
    %p94 = por %p92, %p93
    %p95 = scmp.ne.s32.totalorder %s87, %s89
    %p96 = scmp.eq.s32.totalorder %s16, 2
    %p97 = por %p95, %p96
    %p98 = scmp.ne.s32.totalorder %s89, %s90
    %p99 = scmp.eq.s32.totalorder %s16, 0
    %p100 = por %p98, %p99
    %p101 = scmp.ne.s32.totalorder %s89, %s90
    %p102 = scmp.eq.s32.totalorder %s17, 2
    %p103 = por %p101, %p102
    %p105 = scmp.ne.s32.totalorder %s90, %s104
    %p106 = scmp.eq.s32.totalorder %s17, 0
    %p107 = por %p105, %p106
    %s109 = sadd.s32 %s108, 1
    %p112 = scmp.eq.s32.totalorder %s11, 2
    %p113 = scmp.ne.s32.totalorder %s108, %s110
    %p114 = scmp.eq.s32.totalorder %s11, 0
    %p115 = por %p113, %p114
    %p116 = scmp.ne.s32.totalorder %s108, %s110
    %p117 = scmp.eq.s32.totalorder %s16, 2
    %p118 = por %p116, %p117
    %p119 = scmp.ne.s32.totalorder %s110, %s111
    %p120 = scmp.eq.s32.totalorder %s16, 0
    %p121 = por %p119, %p120
    %p122 = scmp.ne.s32.totalorder %s110, %s111
    %p123 = scmp.eq.s32.totalorder %s17, 2
    %p124 = por %p122, %p123
    %p126 = scmp.ne.s32.totalorder %s111, %s125
    %p127 = scmp.eq.s32.totalorder %s17, 0
    %p128 = por %p126, %p127
    %s129 = ssub.s32 %s11, %s18
    %p130 = scmp.eq.s32.totalorder %s129, 0
    %s132 = sadd.s32 %s131, 1
    %s133 = scalar_select %p130, %s131, %s132
    %p136 = pneg %p130
    %p137 = scmp.eq.s32.totalorder %s11, 2
    %p138 = por %p136, %p137
    %p139 = scmp.ne.s32.totalorder %s131, %s134
    %p140 = scmp.eq.s32.totalorder %s11, 0
    %p141 = por %p139, %p140
    %p142 = scmp.ne.s32.totalorder %s131, %s134
    %p143 = scmp.eq.s32.totalorder %s16, 2
    %p144 = por %p142, %p143
    %p145 = scmp.ne.s32.totalorder %s134, %s135
    %p146 = scmp.eq.s32.totalorder %s16, 0
    %p147 = por %p145, %p146
    %p148 = scmp.ne.s32.totalorder %s134, %s135
    %p149 = scmp.eq.s32.totalorder %s17, 2
    %p150 = por %p148, %p149
    %p152 = scmp.ne.s32.totalorder %s135, %s151
    %p153 = scmp.eq.s32.totalorder %s17, 0
    %p154 = por %p152, %p153
    %p155 = scmp.le.s32.totalorder 1, %s11
    %p156 = scmp.lt.s32.totalorder %s11, 4
    %p157 = pnand %p155, %p156
    %p158 = pneg %p157
    // Predicated region
    $region9: #{decoder_forward.1} parent=5 // pred_check
      _
    $region10: #{decoder_forward.1} parent=5 // pred_check_branch
      %160 = sbr.rel (%p157) target = $region12
    $region11: #{decoder_forward.1} parent=5 // pred_region
      %s161 = ssub.s32 %s11, 1
      // Predicated region
      $region13: #{decoder_forward.1} parent=11 // pred_check
        %p162 = pneg %p58
      $region14: #{decoder_forward.1} parent=11 // pred_check_branch
        %164 = sbr.rel (%p162) target = $region16
      $region15: #{decoder_forward.1} parent=11 // pred_region
        _
      $region16: #{decoder_forward.1} parent=11 // pred_fallthru
        _
      // Predicated region
      $region17: #{decoder_forward.1} parent=11 // pred_check
        %p165 = pneg %p79
      $region18: #{decoder_forward.1} parent=11 // pred_check_branch
        %167 = sbr.rel (%p165) target = $region20
      $region19: #{decoder_forward.1} parent=11 // pred_region
        _
      $region20: #{decoder_forward.1} parent=11 // pred_fallthru
        _
      // Predicated region
      $region21: #{decoder_forward.1} parent=11 // pred_check
        %p168 = pneg %p100
      $region22: #{decoder_forward.1} parent=11 // pred_check_branch
        %170 = sbr.rel (%p168) target = $region24
      $region23: #{decoder_forward.1} parent=11 // pred_region
        _
      $region24: #{decoder_forward.1} parent=11 // pred_fallthru
        _
      // Predicated region
      $region25: #{decoder_forward.1} parent=11 // pred_check
        %p171 = pneg %p121
      $region26: #{decoder_forward.1} parent=11 // pred_check_branch
        %173 = sbr.rel (%p171) target = $region28
      $region27: #{decoder_forward.1} parent=11 // pred_region
        _
      $region28: #{decoder_forward.1} parent=11 // pred_fallthru
        _
    $region12: #{decoder_forward.1} parent=5 // pred_fallthru
      _
    %p174 = scmp.lt.s32.totalorder %s11, 3
    // Predicated region
    $region29: #{decoder_forward.1} parent=5 // pred_check
      %p175 = pneg %p174
    $region30: #{decoder_forward.1} parent=5 // pred_check_branch
      %177 = sbr.rel (%p175) target = $region32
    $region31: #{decoder_forward.1} parent=5 // pred_region
      // Predicated region
      $region33: #{decoder_forward.1} parent=31 // pred_check
        %p178 = pneg %p31
      $region34: #{decoder_forward.1} parent=31 // pred_check_branch
        %180 = sbr.rel (%p178) target = $region36
      $region35: #{decoder_forward.1} parent=31 // pred_region
        %p181 = scmp.lt.s32.totalorder %s11, 2
        %s182 = scalar_select %p181, %s11, 2
        %s183 = smul.addr %s182, 4
        %s184 = smul.addr %s183, 4
        %s185 = scalar_lea.vmem %s0, %s184
      $region36: #{decoder_forward.1} parent=31 // pred_fallthru
        _
    $region32: #{decoder_forward.1} parent=5 // pred_fallthru
      _
    %p186 = scmp.le.s32.totalorder 1, %s11
    %p187 = scmp.lt.s32.totalorder %s11, 4
    %p188 = pnand %p186, %p187
    %p189 = pneg %p188
    // Predicated region
    $region37: #{decoder_forward.1} parent=5 // pred_check
      _
    $region38: #{decoder_forward.1} parent=5 // pred_check_branch
      %191 = sbr.rel (%p188) target = $region40
    $region39: #{decoder_forward.1} parent=5 // pred_region
      %s192 = ssub.s32 %s11, 1
      %p193 = scmp.lt.s32.totalorder %s16, 2
      %s194 = scalar_select %p193, %s16, 2
      %s195 = smul.addr %s194, 4
      %s196 = smul.addr %s195, 4
      %s197 = scalar_lea.vmem %s0, %s196
      %p198 = pneg %p37
      %p199 = pneg %p34
      %p200 = pneg %p58
      %p201 = pneg %p55
      %p202 = pneg %p79
      %p203 = pneg %p76
      %p204 = pneg %p100
      %p205 = pneg %p97
      %p206 = pneg %p121
      %p207 = pneg %p118
      %p208 = pneg %p147
      %p209 = pneg %p144
      %p210 = scmp.lt.s32.totalorder %s16, 2
      %s211 = scalar_select %p210, %s16, 2
      %s212 = smul.addr %s211, 2
      %s213 = smul.addr %s212, 4
      %s214 = scalar_lea.vmem %s5, %s213
      %p215 = scmp.lt.s32.totalorder %s16, 2
      %s216 = scalar_select %p215, %s16, 2
      %s217 = smul.addr %s216, 4
      %s218 = smul.addr %s217, 4
      %s219 = scalar_lea.vmem %s0, %s218
      %p220 = scmp.lt.s32.totalorder %s16, 2
      %s221 = scalar_select %p220, %s16, 2
      %s222 = smul.addr %s221, 2
      %s223 = smul.addr %s222, 4
      %s224 = scalar_lea.vmem %s5, %s223
      %v225 = vld [vmem:[%s1] sm:$0xff]
      %v226 = vld [vmem:[%s1 + $0x8] sm:$0xff]
      %v227 = vld [vmem:[%s1 + $0x10] sm:$0xff]
      %v228 = vld [vmem:[%s1 + $0x18] sm:$0xff]
      %v229 = vld [vmem:[%s1 + $0x20] sm:$0xff]
      %v230 = vld [vmem:[%s1 + $0x28] sm:$0xff]
      %v231 = vld [vmem:[%s1 + $0x30] sm:$0xff]
      %v232 = vld [vmem:[%s1 + $0x38] sm:$0xff]
      %v233 = vld [vmem:[%s1 + $0x40] sm:$0xff]
      %v234 = vld [vmem:[%s1 + $0x48] sm:$0xff]
      %v235 = vld [vmem:[%s1 + $0x50] sm:$0xff]
      %v236 = vld [vmem:[%s1 + $0x58] sm:$0xff]
      %v237 = vld [vmem:[%s1 + $0x60] sm:$0xff]
      %v238 = vld [vmem:[%s1 + $0x68] sm:$0xff]
      %v239 = vld [vmem:[%s1 + $0x70] sm:$0xff]
      %v240 = vld [vmem:[%s1 + $0x78] sm:$0xff]
      %v241 = vld [vmem:[%s1 + $0x80] sm:$0xff]
      %v242 = vld [vmem:[%s1 + $0x88] sm:$0xff]
      %v243 = vld [vmem:[%s1 + $0x90] sm:$0xff]
      %v244 = vld [vmem:[%s1 + $0x98] sm:$0xff]
      %v245 = vld [vmem:[%s1 + $0xa0] sm:$0xff]
      %v246 = vld [vmem:[%s1 + $0xa8] sm:$0xff]
      %v247 = vld [vmem:[%s1 + $0xb0] sm:$0xff]
      %v248 = vld [vmem:[%s1 + $0xb8] sm:$0xff]
      %v249 = vld [vmem:[%s1 + $0xc0] sm:$0xff]
      %v250 = vld [vmem:[%s1 + $0xc8] sm:$0xff]
      %v251 = vld [vmem:[%s1 + $0xd0] sm:$0xff]
      %v252 = vld [vmem:[%s1 + $0xd8] sm:$0xff]
      %v253 = vld [vmem:[%s1 + $0xe0] sm:$0xff]
      %v254 = vld [vmem:[%s1 + $0xe8] sm:$0xff]
      %v255 = vld [vmem:[%s1 + $0xf0] sm:$0xff]
      %v256 = vld [vmem:[%s1 + $0xf8] sm:$0xff]
      %v257 = vld [vmem:[%s1 + $0x100] sm:$0xff]
      %v258 = vld [vmem:[%s1 + $0x108] sm:$0xff]
      %v259 = vld [vmem:[%s1 + $0x110] sm:$0xff]
      %v260 = vld [vmem:[%s1 + $0x118] sm:$0xff]
      %v261 = vld [vmem:[%s1 + $0x120] sm:$0xff]
      %v262 = vld [vmem:[%s1 + $0x128] sm:$0xff]
      %v263 = vld [vmem:[%s1 + $0x130] sm:$0xff]
      %v264 = vld [vmem:[%s1 + $0x138] sm:$0xff]
      %v265 = vld [vmem:[%s1 + $0x140] sm:$0xff]
      %v266 = vld [vmem:[%s1 + $0x148] sm:$0xff]
      %v267 = vld [vmem:[%s1 + $0x150] sm:$0xff]
      %v268 = vld [vmem:[%s1 + $0x158] sm:$0xff]
      %v269 = vld [vmem:[%s1 + $0x160] sm:$0xff]
      %v270 = vld [vmem:[%s1 + $0x168] sm:$0xff]
      %v271 = vld [vmem:[%s1 + $0x170] sm:$0xff]
      %v272 = vld [vmem:[%s1 + $0x178] sm:$0xff]
      %v273 = vld [vmem:[%s1 + $0x180] sm:$0xff]
      %v274 = vld [vmem:[%s1 + $0x188] sm:$0xff]
      %v275 = vld [vmem:[%s1 + $0x190] sm:$0xff]
      %v276 = vld [vmem:[%s1 + $0x198] sm:$0xff]
      %v277 = vld [vmem:[%s1 + $0x1a0] sm:$0xff]
      %v278 = vld [vmem:[%s1 + $0x1a8] sm:$0xff]
      %v279 = vld [vmem:[%s1 + $0x1b0] sm:$0xff]
      %v280 = vld [vmem:[%s1 + $0x1b8] sm:$0xff]
      %v281 = vld [vmem:[%s1 + $0x1c0] sm:$0xff]
      %v282 = vld [vmem:[%s1 + $0x1c8] sm:$0xff]
      %v283 = vld [vmem:[%s1 + $0x1d0] sm:$0xff]
      %v284 = vld [vmem:[%s1 + $0x1d8] sm:$0xff]
      %v285 = vld [vmem:[%s1 + $0x1e0] sm:$0xff]
      %v286 = vld [vmem:[%s1 + $0x1e8] sm:$0xff]
      %v287 = vld [vmem:[%s1 + $0x1f0] sm:$0xff]
      %v288 = vld [vmem:[%s1 + $0x1f8] sm:$0xff]
      %v289 = vld [vmem:[%s1 + $0x200] sm:$0xff]
      %v290 = vld [vmem:[%s1 + $0x208] sm:$0xff]
      %v291 = vld [vmem:[%s1 + $0x210] sm:$0xff]
      %v292 = vld [vmem:[%s1 + $0x218] sm:$0xff]
      %v293 = vld [vmem:[%s1 + $0x220] sm:$0xff]
      %v294 = vld [vmem:[%s1 + $0x228] sm:$0xff]
      %v295 = vld [vmem:[%s1 + $0x230] sm:$0xff]
      %v296 = vld [vmem:[%s1 + $0x238] sm:$0xff]
      %v297 = vld [vmem:[%s1 + $0x240] sm:$0xff]
      %v298 = vld [vmem:[%s1 + $0x248] sm:$0xff]
      %v299 = vld [vmem:[%s1 + $0x250] sm:$0xff]
      %v300 = vld [vmem:[%s1 + $0x258] sm:$0xff]
      %v301 = vld [vmem:[%s1 + $0x260] sm:$0xff]
      %v302 = vld [vmem:[%s1 + $0x268] sm:$0xff]
      %v303 = vld [vmem:[%s1 + $0x270] sm:$0xff]
      %v304 = vld [vmem:[%s1 + $0x278] sm:$0xff]
      %v305 = vld [vmem:[%s1 + $0x280] sm:$0xff]
      %v306 = vld [vmem:[%s1 + $0x288] sm:$0xff]
      %v307 = vld [vmem:[%s1 + $0x290] sm:$0xff]
      %v308 = vld [vmem:[%s1 + $0x298] sm:$0xff]
      %v309 = vld [vmem:[%s1 + $0x2a0] sm:$0xff]
      %v310 = vld [vmem:[%s1 + $0x2a8] sm:$0xff]
      %v311 = vld [vmem:[%s1 + $0x2b0] sm:$0xff]
      %v312 = vld [vmem:[%s1 + $0x2b8] sm:$0xff]
      %v313 = vld [vmem:[%s1 + $0x2c0] sm:$0xff]
      %v314 = vld [vmem:[%s1 + $0x2c8] sm:$0xff]
      %v315 = vld [vmem:[%s1 + $0x2d0] sm:$0xff]
      %v316 = vld [vmem:[%s1 + $0x2d8] sm:$0xff]
      %v317 = vld [vmem:[%s1 + $0x2e0] sm:$0xff]
      %v318 = vld [vmem:[%s1 + $0x2e8] sm:$0xff]
      %v319 = vld [vmem:[%s1 + $0x2f0] sm:$0xff]
      %v320 = vld [vmem:[%s1 + $0x2f8] sm:$0xff]
      %v321 = vld [vmem:[%s1 + $0x300] sm:$0xff]
      %v322 = vld [vmem:[%s1 + $0x308] sm:$0xff]
      %v323 = vld [vmem:[%s1 + $0x310] sm:$0xff]
      %v324 = vld [vmem:[%s1 + $0x318] sm:$0xff]
      %v325 = vld [vmem:[%s1 + $0x320] sm:$0xff]
      %v326 = vld [vmem:[%s1 + $0x328] sm:$0xff]
      %v327 = vld [vmem:[%s1 + $0x330] sm:$0xff]
      %v328 = vld [vmem:[%s1 + $0x338] sm:$0xff]
      %v329 = vld [vmem:[%s1 + $0x340] sm:$0xff]
      %v330 = vld [vmem:[%s1 + $0x348] sm:$0xff]
      %v331 = vld [vmem:[%s1 + $0x350] sm:$0xff]
      %v332 = vld [vmem:[%s1 + $0x358] sm:$0xff]
      %v333 = vld [vmem:[%s1 + $0x360] sm:$0xff]
      %v334 = vld [vmem:[%s1 + $0x368] sm:$0xff]
      %v335 = vld [vmem:[%s1 + $0x370] sm:$0xff]
      %v336 = vld [vmem:[%s1 + $0x378] sm:$0xff]
      %v337 = vld [vmem:[%s1 + $0x380] sm:$0xff]
      %v338 = vld [vmem:[%s1 + $0x388] sm:$0xff]
      %v339 = vld [vmem:[%s1 + $0x390] sm:$0xff]
      %v340 = vld [vmem:[%s1 + $0x398] sm:$0xff]
      %v341 = vld [vmem:[%s1 + $0x3a0] sm:$0xff]
      %v342 = vld [vmem:[%s1 + $0x3a8] sm:$0xff]
      %v343 = vld [vmem:[%s1 + $0x3b0] sm:$0xff]
      %v344 = vld [vmem:[%s1 + $0x3b8] sm:$0xff]
      %v345 = vld [vmem:[%s1 + $0x3c0] sm:$0xff]
      %v346 = vld [vmem:[%s1 + $0x3c8] sm:$0xff]
      %v347 = vld [vmem:[%s1 + $0x3d0] sm:$0xff]
      %v348 = vld [vmem:[%s1 + $0x3d8] sm:$0xff]
      %v349 = vld [vmem:[%s1 + $0x3e0] sm:$0xff]
      %v350 = vld [vmem:[%s1 + $0x3e8] sm:$0xff]
      %v351 = vld [vmem:[%s1 + $0x3f0] sm:$0xff]
      %v352 = vld [vmem:[%s1 + $0x3f8] sm:$0xff]
      %v353 = vld [vmem:[%s3] sm:$0xff]
      %v354 = vld [vmem:[%s3 + $0x8] sm:$0xff]
      %v355 = vld [vmem:[%s3 + $0x10] sm:$0xff]
      %v356 = vld [vmem:[%s3 + $0x18] sm:$0xff]
      %v357 = vld [vmem:[%s3 + $0x20] sm:$0xff]
      %v358 = vld [vmem:[%s3 + $0x28] sm:$0xff]
      %v359 = vld [vmem:[%s3 + $0x30] sm:$0xff]
      %v360 = vld [vmem:[%s3 + $0x38] sm:$0xff]
      %v361 = vld [vmem:[%s3 + $0x40] sm:$0xff]
      %v362 = vld [vmem:[%s3 + $0x48] sm:$0xff]
      %v363 = vld [vmem:[%s3 + $0x50] sm:$0xff]
      %v364 = vld [vmem:[%s3 + $0x58] sm:$0xff]
      %v365 = vld [vmem:[%s3 + $0x60] sm:$0xff]
      %v366 = vld [vmem:[%s3 + $0x68] sm:$0xff]
      %v367 = vld [vmem:[%s3 + $0x70] sm:$0xff]
      %v368 = vld [vmem:[%s3 + $0x78] sm:$0xff]
      %v369 = vld [vmem:[%s3 + $0x80] sm:$0xff]
      %v370 = vld [vmem:[%s3 + $0x88] sm:$0xff]
      %v371 = vld [vmem:[%s3 + $0x90] sm:$0xff]
      %v372 = vld [vmem:[%s3 + $0x98] sm:$0xff]
      %v373 = vld [vmem:[%s3 + $0xa0] sm:$0xff]
      %v374 = vld [vmem:[%s3 + $0xa8] sm:$0xff]
      %v375 = vld [vmem:[%s3 + $0xb0] sm:$0xff]
      %v376 = vld [vmem:[%s3 + $0xb8] sm:$0xff]
      %v377 = vld [vmem:[%s3 + $0xc0] sm:$0xff]
      %v378 = vld [vmem:[%s3 + $0xc8] sm:$0xff]
      %v379 = vld [vmem:[%s3 + $0xd0] sm:$0xff]
      %v380 = vld [vmem:[%s3 + $0xd8] sm:$0xff]
      %v381 = vld [vmem:[%s3 + $0xe0] sm:$0xff]
      %v382 = vld [vmem:[%s3 + $0xe8] sm:$0xff]
      %v383 = vld [vmem:[%s3 + $0xf0] sm:$0xff]
      %v384 = vld [vmem:[%s3 + $0xf8] sm:$0xff]
      %v385 = vld [vmem:[%s3 + $0x100] sm:$0xff]
      %v386 = vld [vmem:[%s3 + $0x108] sm:$0xff]
      %v387 = vld [vmem:[%s3 + $0x110] sm:$0xff]
      %v388 = vld [vmem:[%s3 + $0x118] sm:$0xff]
      %v389 = vld [vmem:[%s3 + $0x120] sm:$0xff]
      %v390 = vld [vmem:[%s3 + $0x128] sm:$0xff]
      %v391 = vld [vmem:[%s3 + $0x130] sm:$0xff]
      %v392 = vld [vmem:[%s3 + $0x138] sm:$0xff]
      %v393 = vld [vmem:[%s3 + $0x140] sm:$0xff]
      %v394 = vld [vmem:[%s3 + $0x148] sm:$0xff]
      %v395 = vld [vmem:[%s3 + $0x150] sm:$0xff]
      %v396 = vld [vmem:[%s3 + $0x158] sm:$0xff]
      %v397 = vld [vmem:[%s3 + $0x160] sm:$0xff]
      %v398 = vld [vmem:[%s3 + $0x168] sm:$0xff]
      %v399 = vld [vmem:[%s3 + $0x170] sm:$0xff]
      %v400 = vld [vmem:[%s3 + $0x178] sm:$0xff]
      %v401 = vld [vmem:[%s3 + $0x180] sm:$0xff]
      %v402 = vld [vmem:[%s3 + $0x188] sm:$0xff]
      %v403 = vld [vmem:[%s3 + $0x190] sm:$0xff]
      %v404 = vld [vmem:[%s3 + $0x198] sm:$0xff]
      %v405 = vld [vmem:[%s3 + $0x1a0] sm:$0xff]
      %v406 = vld [vmem:[%s3 + $0x1a8] sm:$0xff]
      %v407 = vld [vmem:[%s3 + $0x1b0] sm:$0xff]
      %v408 = vld [vmem:[%s3 + $0x1b8] sm:$0xff]
      %v409 = vld [vmem:[%s3 + $0x1c0] sm:$0xff]
      %v410 = vld [vmem:[%s3 + $0x1c8] sm:$0xff]
      %v411 = vld [vmem:[%s3 + $0x1d0] sm:$0xff]
      %v412 = vld [vmem:[%s3 + $0x1d8] sm:$0xff]
      %v413 = vld [vmem:[%s3 + $0x1e0] sm:$0xff]
      %v414 = vld [vmem:[%s3 + $0x1e8] sm:$0xff]
      %v415 = vld [vmem:[%s3 + $0x1f0] sm:$0xff]
      %v416 = vld [vmem:[%s3 + $0x1f8] sm:$0xff]
      %v417 = vld [vmem:[%s2] sm:$0xf]
      %v418 = vld [vmem:[%s4] sm:$0x3]
      %v419 = vld [vmem:[%s219] sm:$0xff]
      %v420 = vld [vmem:[%s219 + $0x8] sm:$0xff]
      %v422 = vperm.slane %v417, 0
      %v423 = vperm.slane %v417, 1
      %v424 = vperm.slane %v417, 2
      %v425 = vperm.slane %v417, 3
      %v432 = vunpack.c.l.b16 %v419
      %v433 = vunpack.c.h.b16 %v419
      %v434 = vunpack.c.l.b16 %v420
      %v435 = vunpack.c.h.b16 %v420
      %v436 = vpack.c.b16 %v432, %v432
      %v437 = vpack.c.b16 %v433, %v433
      %v438 = vpack.c.b16 %v434, %v434
      %v439 = vpack.c.b16 %v435, %v435
      %v572 = vunpack.c.l.b16 %v225
      %v573 = vunpack.c.h.b16 %v225
      %v574 = vunpack.c.l.b16 %v226
      %v575 = vunpack.c.h.b16 %v226
      %v576 = vunpack.c.l.b16 %v227
      %v577 = vunpack.c.h.b16 %v227
      %v578 = vunpack.c.l.b16 %v228
      %v579 = vunpack.c.h.b16 %v228
      %v580 = vunpack.c.l.b16 %v229
      %v581 = vunpack.c.h.b16 %v229
      %v582 = vunpack.c.l.b16 %v230
      %v583 = vunpack.c.h.b16 %v230
      %v584 = vunpack.c.l.b16 %v231
      %v585 = vunpack.c.h.b16 %v231
      %v586 = vunpack.c.l.b16 %v232
      %v587 = vunpack.c.h.b16 %v232
      %v588 = vunpack.c.l.b16 %v233
      %v589 = vunpack.c.h.b16 %v233
      %v590 = vunpack.c.l.b16 %v234
      %v591 = vunpack.c.h.b16 %v234
      %v592 = vunpack.c.l.b16 %v235
      %v593 = vunpack.c.h.b16 %v235
      %v594 = vunpack.c.l.b16 %v236
      %v595 = vunpack.c.h.b16 %v236
      %v596 = vunpack.c.l.b16 %v237
      %v597 = vunpack.c.h.b16 %v237
      %v598 = vunpack.c.l.b16 %v238
      %v599 = vunpack.c.h.b16 %v238
      %v600 = vunpack.c.l.b16 %v239
      %v601 = vunpack.c.h.b16 %v239
      %v602 = vunpack.c.l.b16 %v240
      %v603 = vunpack.c.h.b16 %v240
      %v604 = vunpack.c.l.b16 %v241
      %v605 = vunpack.c.h.b16 %v241
      %v606 = vunpack.c.l.b16 %v242
      %v607 = vunpack.c.h.b16 %v242
      %v608 = vunpack.c.l.b16 %v243
      %v609 = vunpack.c.h.b16 %v243
      %v610 = vunpack.c.l.b16 %v244
      %v611 = vunpack.c.h.b16 %v244
      %v612 = vunpack.c.l.b16 %v245
      %v613 = vunpack.c.h.b16 %v245
      %v614 = vunpack.c.l.b16 %v246
      %v615 = vunpack.c.h.b16 %v246
      %v616 = vunpack.c.l.b16 %v247
      %v617 = vunpack.c.h.b16 %v247
      %v618 = vunpack.c.l.b16 %v248
      %v619 = vunpack.c.h.b16 %v248
      %v620 = vunpack.c.l.b16 %v249
      %v621 = vunpack.c.h.b16 %v249
      %v622 = vunpack.c.l.b16 %v250
      %v623 = vunpack.c.h.b16 %v250
      %v624 = vunpack.c.l.b16 %v251
      %v625 = vunpack.c.h.b16 %v251
      %v626 = vunpack.c.l.b16 %v252
      %v627 = vunpack.c.h.b16 %v252
      %v628 = vunpack.c.l.b16 %v253
      %v629 = vunpack.c.h.b16 %v253
      %v630 = vunpack.c.l.b16 %v254
      %v631 = vunpack.c.h.b16 %v254
      %v632 = vunpack.c.l.b16 %v255
      %v633 = vunpack.c.h.b16 %v255
      %v634 = vunpack.c.l.b16 %v256
      %v635 = vunpack.c.h.b16 %v256
      %v636 = vunpack.c.l.b16 %v257
      %v637 = vunpack.c.h.b16 %v257
      %v638 = vunpack.c.l.b16 %v258
      %v639 = vunpack.c.h.b16 %v258
      %v640 = vunpack.c.l.b16 %v259
      %v641 = vunpack.c.h.b16 %v259
      %v642 = vunpack.c.l.b16 %v260
      %v643 = vunpack.c.h.b16 %v260
      %v644 = vunpack.c.l.b16 %v261
      %v645 = vunpack.c.h.b16 %v261
      %v646 = vunpack.c.l.b16 %v262
      %v647 = vunpack.c.h.b16 %v262
      %v648 = vunpack.c.l.b16 %v263
      %v649 = vunpack.c.h.b16 %v263
      %v650 = vunpack.c.l.b16 %v264
      %v651 = vunpack.c.h.b16 %v264
      %v652 = vunpack.c.l.b16 %v265
      %v653 = vunpack.c.h.b16 %v265
      %v654 = vunpack.c.l.b16 %v266
      %v655 = vunpack.c.h.b16 %v266
      %v656 = vunpack.c.l.b16 %v267
      %v657 = vunpack.c.h.b16 %v267
      %v658 = vunpack.c.l.b16 %v268
      %v659 = vunpack.c.h.b16 %v268
      %v660 = vunpack.c.l.b16 %v269
      %v661 = vunpack.c.h.b16 %v269
      %v662 = vunpack.c.l.b16 %v270
      %v663 = vunpack.c.h.b16 %v270
      %v664 = vunpack.c.l.b16 %v271
      %v665 = vunpack.c.h.b16 %v271
      %v666 = vunpack.c.l.b16 %v272
      %v667 = vunpack.c.h.b16 %v272
      %v668 = vunpack.c.l.b16 %v273
      %v669 = vunpack.c.h.b16 %v273
      %v670 = vunpack.c.l.b16 %v274
      %v671 = vunpack.c.h.b16 %v274
      %v672 = vunpack.c.l.b16 %v275
      %v673 = vunpack.c.h.b16 %v275
      %v674 = vunpack.c.l.b16 %v276
      %v675 = vunpack.c.h.b16 %v276
      %v676 = vunpack.c.l.b16 %v277
      %v677 = vunpack.c.h.b16 %v277
      %v678 = vunpack.c.l.b16 %v278
      %v679 = vunpack.c.h.b16 %v278
      %v680 = vunpack.c.l.b16 %v279
      %v681 = vunpack.c.h.b16 %v279
      %v682 = vunpack.c.l.b16 %v280
      %v683 = vunpack.c.h.b16 %v280
      %v684 = vunpack.c.l.b16 %v281
      %v685 = vunpack.c.h.b16 %v281
      %v686 = vunpack.c.l.b16 %v282
      %v687 = vunpack.c.h.b16 %v282
      %v688 = vunpack.c.l.b16 %v283
      %v689 = vunpack.c.h.b16 %v283
      %v690 = vunpack.c.l.b16 %v284
      %v691 = vunpack.c.h.b16 %v284
      %v692 = vunpack.c.l.b16 %v285
      %v693 = vunpack.c.h.b16 %v285
      %v694 = vunpack.c.l.b16 %v286
      %v695 = vunpack.c.h.b16 %v286
      %v696 = vunpack.c.l.b16 %v287
      %v697 = vunpack.c.h.b16 %v287
      %v698 = vunpack.c.l.b16 %v288
      %v699 = vunpack.c.h.b16 %v288
      %v700 = vunpack.c.l.b16 %v289
      %v701 = vunpack.c.h.b16 %v289
      %v702 = vunpack.c.l.b16 %v290
      %v703 = vunpack.c.h.b16 %v290
      %v704 = vunpack.c.l.b16 %v291
      %v705 = vunpack.c.h.b16 %v291
      %v706 = vunpack.c.l.b16 %v292
      %v707 = vunpack.c.h.b16 %v292
      %v708 = vunpack.c.l.b16 %v293
      %v709 = vunpack.c.h.b16 %v293
      %v710 = vunpack.c.l.b16 %v294
      %v711 = vunpack.c.h.b16 %v294
      %v712 = vunpack.c.l.b16 %v295
      %v713 = vunpack.c.h.b16 %v295
      %v714 = vunpack.c.l.b16 %v296
      %v715 = vunpack.c.h.b16 %v296
      %v716 = vunpack.c.l.b16 %v297
      %v717 = vunpack.c.h.b16 %v297
      %v718 = vunpack.c.l.b16 %v298
      %v719 = vunpack.c.h.b16 %v298
      %v720 = vunpack.c.l.b16 %v299
      %v721 = vunpack.c.h.b16 %v299
      %v722 = vunpack.c.l.b16 %v300
      %v723 = vunpack.c.h.b16 %v300
      %v724 = vunpack.c.l.b16 %v301
      %v725 = vunpack.c.h.b16 %v301
      %v726 = vunpack.c.l.b16 %v302
      %v727 = vunpack.c.h.b16 %v302
      %v728 = vunpack.c.l.b16 %v303
      %v729 = vunpack.c.h.b16 %v303
      %v730 = vunpack.c.l.b16 %v304
      %v731 = vunpack.c.h.b16 %v304
      %v732 = vunpack.c.l.b16 %v305
      %v733 = vunpack.c.h.b16 %v305
      %v734 = vunpack.c.l.b16 %v306
      %v735 = vunpack.c.h.b16 %v306
      %v736 = vunpack.c.l.b16 %v307
      %v737 = vunpack.c.h.b16 %v307
      %v738 = vunpack.c.l.b16 %v308
      %v739 = vunpack.c.h.b16 %v308
      %v740 = vunpack.c.l.b16 %v309
      %v741 = vunpack.c.h.b16 %v309
      %v742 = vunpack.c.l.b16 %v310
      %v743 = vunpack.c.h.b16 %v310
      %v744 = vunpack.c.l.b16 %v311
      %v745 = vunpack.c.h.b16 %v311
      %v746 = vunpack.c.l.b16 %v312
      %v747 = vunpack.c.h.b16 %v312
      %v748 = vunpack.c.l.b16 %v313
      %v749 = vunpack.c.h.b16 %v313
      %v750 = vunpack.c.l.b16 %v314
      %v751 = vunpack.c.h.b16 %v314
      %v752 = vunpack.c.l.b16 %v315
      %v753 = vunpack.c.h.b16 %v315
      %v754 = vunpack.c.l.b16 %v316
      %v755 = vunpack.c.h.b16 %v316
      %v756 = vunpack.c.l.b16 %v317
      %v757 = vunpack.c.h.b16 %v317
      %v758 = vunpack.c.l.b16 %v318
      %v759 = vunpack.c.h.b16 %v318
      %v760 = vunpack.c.l.b16 %v319
      %v761 = vunpack.c.h.b16 %v319
      %v762 = vunpack.c.l.b16 %v320
      %v763 = vunpack.c.h.b16 %v320
      %v764 = vunpack.c.l.b16 %v321
      %v765 = vunpack.c.h.b16 %v321
      %v766 = vunpack.c.l.b16 %v322
      %v767 = vunpack.c.h.b16 %v322
      %v768 = vunpack.c.l.b16 %v323
      %v769 = vunpack.c.h.b16 %v323
      %v770 = vunpack.c.l.b16 %v324
      %v771 = vunpack.c.h.b16 %v324
      %v772 = vunpack.c.l.b16 %v325
      %v773 = vunpack.c.h.b16 %v325
      %v774 = vunpack.c.l.b16 %v326
      %v775 = vunpack.c.h.b16 %v326
      %v776 = vunpack.c.l.b16 %v327
      %v777 = vunpack.c.h.b16 %v327
      %v778 = vunpack.c.l.b16 %v328
      %v779 = vunpack.c.h.b16 %v328
      %v780 = vunpack.c.l.b16 %v329
      %v781 = vunpack.c.h.b16 %v329
      %v782 = vunpack.c.l.b16 %v330
      %v783 = vunpack.c.h.b16 %v330
      %v784 = vunpack.c.l.b16 %v331
      %v785 = vunpack.c.h.b16 %v331
      %v786 = vunpack.c.l.b16 %v332
      %v787 = vunpack.c.h.b16 %v332
      %v788 = vunpack.c.l.b16 %v333
      %v789 = vunpack.c.h.b16 %v333
      %v790 = vunpack.c.l.b16 %v334
      %v791 = vunpack.c.h.b16 %v334
      %v792 = vunpack.c.l.b16 %v335
      %v793 = vunpack.c.h.b16 %v335
      %v794 = vunpack.c.l.b16 %v336
      %v795 = vunpack.c.h.b16 %v336
      %v796 = vunpack.c.l.b16 %v337
      %v797 = vunpack.c.h.b16 %v337
      %v798 = vunpack.c.l.b16 %v338
      %v799 = vunpack.c.h.b16 %v338
      %v800 = vunpack.c.l.b16 %v339
      %v801 = vunpack.c.h.b16 %v339
      %v802 = vunpack.c.l.b16 %v340
      %v803 = vunpack.c.h.b16 %v340
      %v804 = vunpack.c.l.b16 %v341
      %v805 = vunpack.c.h.b16 %v341
      %v806 = vunpack.c.l.b16 %v342
      %v807 = vunpack.c.h.b16 %v342
      %v808 = vunpack.c.l.b16 %v343
      %v809 = vunpack.c.h.b16 %v343
      %v810 = vunpack.c.l.b16 %v344
      %v811 = vunpack.c.h.b16 %v344
      %v812 = vunpack.c.l.b16 %v345
      %v813 = vunpack.c.h.b16 %v345
      %v814 = vunpack.c.l.b16 %v346
      %v815 = vunpack.c.h.b16 %v346
      %v816 = vunpack.c.l.b16 %v347
      %v817 = vunpack.c.h.b16 %v347
      %v818 = vunpack.c.l.b16 %v348
      %v819 = vunpack.c.h.b16 %v348
      %v820 = vunpack.c.l.b16 %v349
      %v821 = vunpack.c.h.b16 %v349
      %v822 = vunpack.c.l.b16 %v350
      %v823 = vunpack.c.h.b16 %v350
      %v824 = vunpack.c.l.b16 %v351
      %v825 = vunpack.c.h.b16 %v351
      %v826 = vunpack.c.l.b16 %v352
      %v827 = vunpack.c.h.b16 %v352
      %v828 = vpack.c.b16 %v576, %v572
      %v829 = vpack.c.b16 %v577, %v573
      %v830 = vpack.c.b16 %v578, %v574
      %v831 = vpack.c.b16 %v579, %v575
      %v832 = vpack.c.b16 %v584, %v580
      %v833 = vpack.c.b16 %v585, %v581
      %v834 = vpack.c.b16 %v586, %v582
      %v835 = vpack.c.b16 %v587, %v583
      %v836 = vpack.c.b16 %v592, %v588
      %v837 = vpack.c.b16 %v593, %v589
      %v838 = vpack.c.b16 %v594, %v590
      %v839 = vpack.c.b16 %v595, %v591
      %v840 = vpack.c.b16 %v600, %v596
      %v841 = vpack.c.b16 %v601, %v597
      %v842 = vpack.c.b16 %v602, %v598
      %v843 = vpack.c.b16 %v603, %v599
      %v844 = vpack.c.b16 %v608, %v604
      %v845 = vpack.c.b16 %v609, %v605
      %v846 = vpack.c.b16 %v610, %v606
      %v847 = vpack.c.b16 %v611, %v607
      %v848 = vpack.c.b16 %v616, %v612
      %v849 = vpack.c.b16 %v617, %v613
      %v850 = vpack.c.b16 %v618, %v614
      %v851 = vpack.c.b16 %v619, %v615
      %v852 = vpack.c.b16 %v624, %v620
      %v853 = vpack.c.b16 %v625, %v621
      %v854 = vpack.c.b16 %v626, %v622
      %v855 = vpack.c.b16 %v627, %v623
      %v856 = vpack.c.b16 %v632, %v628
      %v857 = vpack.c.b16 %v633, %v629
      %v858 = vpack.c.b16 %v634, %v630
      %v859 = vpack.c.b16 %v635, %v631
      %v860 = vpack.c.b16 %v640, %v636
      %v861 = vpack.c.b16 %v641, %v637
      %v862 = vpack.c.b16 %v642, %v638
      %v863 = vpack.c.b16 %v643, %v639
      %v864 = vpack.c.b16 %v648, %v644
      %v865 = vpack.c.b16 %v649, %v645
      %v866 = vpack.c.b16 %v650, %v646
      %v867 = vpack.c.b16 %v651, %v647
      %v868 = vpack.c.b16 %v656, %v652
      %v869 = vpack.c.b16 %v657, %v653
      %v870 = vpack.c.b16 %v658, %v654
      %v871 = vpack.c.b16 %v659, %v655
      %v872 = vpack.c.b16 %v664, %v660
      %v873 = vpack.c.b16 %v665, %v661
      %v874 = vpack.c.b16 %v666, %v662
      %v875 = vpack.c.b16 %v667, %v663
      %v876 = vpack.c.b16 %v672, %v668
      %v877 = vpack.c.b16 %v673, %v669
      %v878 = vpack.c.b16 %v674, %v670
      %v879 = vpack.c.b16 %v675, %v671
      %v880 = vpack.c.b16 %v680, %v676
      %v881 = vpack.c.b16 %v681, %v677
      %v882 = vpack.c.b16 %v682, %v678
      %v883 = vpack.c.b16 %v683, %v679
      %v884 = vpack.c.b16 %v688, %v684
      %v885 = vpack.c.b16 %v689, %v685
      %v886 = vpack.c.b16 %v690, %v686
      %v887 = vpack.c.b16 %v691, %v687
      %v888 = vpack.c.b16 %v696, %v692
      %v889 = vpack.c.b16 %v697, %v693
      %v890 = vpack.c.b16 %v698, %v694
      %v891 = vpack.c.b16 %v699, %v695
      %v892 = vpack.c.b16 %v704, %v700
      %v893 = vpack.c.b16 %v705, %v701
      %v894 = vpack.c.b16 %v706, %v702
      %v895 = vpack.c.b16 %v707, %v703
      %v896 = vpack.c.b16 %v712, %v708
      %v897 = vpack.c.b16 %v713, %v709
      %v898 = vpack.c.b16 %v714, %v710
      %v899 = vpack.c.b16 %v715, %v711
      %v900 = vpack.c.b16 %v720, %v716
      %v901 = vpack.c.b16 %v721, %v717
      %v902 = vpack.c.b16 %v722, %v718
      %v903 = vpack.c.b16 %v723, %v719
      %v904 = vpack.c.b16 %v728, %v724
      %v905 = vpack.c.b16 %v729, %v725
      %v906 = vpack.c.b16 %v730, %v726
      %v907 = vpack.c.b16 %v731, %v727
      %v908 = vpack.c.b16 %v736, %v732
      %v909 = vpack.c.b16 %v737, %v733
      %v910 = vpack.c.b16 %v738, %v734
      %v911 = vpack.c.b16 %v739, %v735
      %v912 = vpack.c.b16 %v744, %v740
      %v913 = vpack.c.b16 %v745, %v741
      %v914 = vpack.c.b16 %v746, %v742
      %v915 = vpack.c.b16 %v747, %v743
      %v916 = vpack.c.b16 %v752, %v748
      %v917 = vpack.c.b16 %v753, %v749
      %v918 = vpack.c.b16 %v754, %v750
      %v919 = vpack.c.b16 %v755, %v751
      %v920 = vpack.c.b16 %v760, %v756
      %v921 = vpack.c.b16 %v761, %v757
      %v922 = vpack.c.b16 %v762, %v758
      %v923 = vpack.c.b16 %v763, %v759
      %v924 = vpack.c.b16 %v768, %v764
      %v925 = vpack.c.b16 %v769, %v765
      %v926 = vpack.c.b16 %v770, %v766
      %v927 = vpack.c.b16 %v771, %v767
      %v928 = vpack.c.b16 %v776, %v772
      %v929 = vpack.c.b16 %v777, %v773
      %v930 = vpack.c.b16 %v778, %v774
      %v931 = vpack.c.b16 %v779, %v775
      %v932 = vpack.c.b16 %v784, %v780
      %v933 = vpack.c.b16 %v785, %v781
      %v934 = vpack.c.b16 %v786, %v782
      %v935 = vpack.c.b16 %v787, %v783
      %v936 = vpack.c.b16 %v792, %v788
      %v937 = vpack.c.b16 %v793, %v789
      %v938 = vpack.c.b16 %v794, %v790
      %v939 = vpack.c.b16 %v795, %v791
      %v940 = vpack.c.b16 %v800, %v796
      %v941 = vpack.c.b16 %v801, %v797
      %v942 = vpack.c.b16 %v802, %v798
      %v943 = vpack.c.b16 %v803, %v799
      %v944 = vpack.c.b16 %v808, %v804
      %v945 = vpack.c.b16 %v809, %v805
      %v946 = vpack.c.b16 %v810, %v806
      %v947 = vpack.c.b16 %v811, %v807
      %v948 = vpack.c.b16 %v816, %v812
      %v949 = vpack.c.b16 %v817, %v813
      %v950 = vpack.c.b16 %v818, %v814
      %v951 = vpack.c.b16 %v819, %v815
      %v952 = vpack.c.b16 %v824, %v820
      %v953 = vpack.c.b16 %v825, %v821
      %v954 = vpack.c.b16 %v826, %v822
      %v955 = vpack.c.b16 %v827, %v823
      %1084 = vmatpush.bf16.msra.mxu0 %v856
      %1085 = vmatpush.bf16.msra.mxu0 %v852
      %1086 = vmatpush.bf16.msra.mxu0 %v848
      %1087 = vmatpush.bf16.msra.mxu0 %v844
      %1088 = vmatpush.bf16.msra.mxu0 %v840
      %1089 = vmatpush.bf16.msra.mxu0 %v836
      %1090 = vmatpush.bf16.msra.mxu0 %v832
      %1091 = vmatpush.bf16.msra.mxu0 %v828
      %1092 = vmatmul.bf16.gmra.mxu0 %v436
      %v1093 = vpop.f32.mrf.mxu0
      %v1094 = vadd.f32 %v422, %v1093
      %v1095 = vpop.f32.mrf.mxu0
      %1096 = vdwg.mxu0
      %1097 = vmatpush.bf16.msra.mxu0 %v888
      %1098 = vmatpush.bf16.msra.mxu0 %v884
      %1099 = vmatpush.bf16.msra.mxu0 %v880
      %1100 = vmatpush.bf16.msra.mxu0 %v876
      %1101 = vmatpush.bf16.msra.mxu0 %v872
      %1102 = vmatpush.bf16.msra.mxu0 %v868
      %1103 = vmatpush.bf16.msra.mxu0 %v864
      %1104 = vmatpush.bf16.msra.mxu0 %v860
      %1105 = vmatmul.bf16.gmra.mxu0 %v437
      %v1106 = vpop.f32.mrf.mxu0
      %v1107 = vadd.f32 %v1094, %v1106
      %v1108 = vpop.f32.mrf.mxu0
      %1109 = vdwg.mxu0
      %1110 = vmatpush.bf16.msra.mxu0 %v920
      %1111 = vmatpush.bf16.msra.mxu0 %v916
      %1112 = vmatpush.bf16.msra.mxu0 %v912
      %1113 = vmatpush.bf16.msra.mxu0 %v908
      %1114 = vmatpush.bf16.msra.mxu0 %v904
      %1115 = vmatpush.bf16.msra.mxu0 %v900
      %1116 = vmatpush.bf16.msra.mxu0 %v896
      %1117 = vmatpush.bf16.msra.mxu0 %v892
      %1118 = vmatmul.bf16.gmra.mxu0 %v438
      %v1119 = vpop.f32.mrf.mxu0
      %v1120 = vadd.f32 %v1107, %v1119
      %v1121 = vpop.f32.mrf.mxu0
      %1122 = vdwg.mxu0
      %1123 = vmatpush.bf16.msra.mxu0 %v952
      %1124 = vmatpush.bf16.msra.mxu0 %v948
      %1125 = vmatpush.bf16.msra.mxu0 %v944
      %1126 = vmatpush.bf16.msra.mxu0 %v940
      %1127 = vmatpush.bf16.msra.mxu0 %v936
      %1128 = vmatpush.bf16.msra.mxu0 %v932
      %1129 = vmatpush.bf16.msra.mxu0 %v928
      %1130 = vmatpush.bf16.msra.mxu0 %v924
      %1131 = vmatmul.bf16.gmra.mxu0 %v439
      %v1132 = vpop.f32.mrf.mxu0
      %v1133 = vadd.f32 %v1120, %v1132
      %v1134 = vpop.f32.mrf.mxu0
      %1135 = vdwg.mxu0
      %1136 = vmatpush.bf16.msra.mxu0 %v857
      %1137 = vmatpush.bf16.msra.mxu0 %v853
      %1138 = vmatpush.bf16.msra.mxu0 %v849
      %1139 = vmatpush.bf16.msra.mxu0 %v845
      %1140 = vmatpush.bf16.msra.mxu0 %v841
      %1141 = vmatpush.bf16.msra.mxu0 %v837
      %1142 = vmatpush.bf16.msra.mxu0 %v833
      %1143 = vmatpush.bf16.msra.mxu0 %v829
      %1144 = vmatmul.bf16.gmra.mxu0 %v436
      %v1145 = vpop.f32.mrf.mxu0
      %v1146 = vadd.f32 %v423, %v1145
      %v1147 = vpop.f32.mrf.mxu0
      %1148 = vdwg.mxu0
      %1149 = vmatpush.bf16.msra.mxu0 %v889
      %1150 = vmatpush.bf16.msra.mxu0 %v885
      %1151 = vmatpush.bf16.msra.mxu0 %v881
      %1152 = vmatpush.bf16.msra.mxu0 %v877
      %1153 = vmatpush.bf16.msra.mxu0 %v873
      %1154 = vmatpush.bf16.msra.mxu0 %v869
      %1155 = vmatpush.bf16.msra.mxu0 %v865
      %1156 = vmatpush.bf16.msra.mxu0 %v861
      %1157 = vmatmul.bf16.gmra.mxu0 %v437
      %v1158 = vpop.f32.mrf.mxu0
      %v1159 = vadd.f32 %v1146, %v1158
      %v1160 = vpop.f32.mrf.mxu0
      %1161 = vdwg.mxu0
      %1162 = vmatpush.bf16.msra.mxu0 %v921
      %1163 = vmatpush.bf16.msra.mxu0 %v917
      %1164 = vmatpush.bf16.msra.mxu0 %v913
      %1165 = vmatpush.bf16.msra.mxu0 %v909
      %1166 = vmatpush.bf16.msra.mxu0 %v905
      %1167 = vmatpush.bf16.msra.mxu0 %v901
      %1168 = vmatpush.bf16.msra.mxu0 %v897
      %1169 = vmatpush.bf16.msra.mxu0 %v893
      %1170 = vmatmul.bf16.gmra.mxu0 %v438
      %v1171 = vpop.f32.mrf.mxu0
      %v1172 = vadd.f32 %v1159, %v1171
      %v1173 = vpop.f32.mrf.mxu0
      %1174 = vdwg.mxu0
      %1175 = vmatpush.bf16.msra.mxu0 %v953
      %1176 = vmatpush.bf16.msra.mxu0 %v949
      %1177 = vmatpush.bf16.msra.mxu0 %v945
      %1178 = vmatpush.bf16.msra.mxu0 %v941
      %1179 = vmatpush.bf16.msra.mxu0 %v937
      %1180 = vmatpush.bf16.msra.mxu0 %v933
      %1181 = vmatpush.bf16.msra.mxu0 %v929
      %1182 = vmatpush.bf16.msra.mxu0 %v925
      %1183 = vmatmul.bf16.gmra.mxu0 %v439
      %v1184 = vpop.f32.mrf.mxu0
      %v1185 = vadd.f32 %v1172, %v1184
      %v1186 = vpop.f32.mrf.mxu0
      %1187 = vdwg.mxu0
      %1188 = vmatpush.bf16.msra.mxu0 %v858
      %1189 = vmatpush.bf16.msra.mxu0 %v854
      %1190 = vmatpush.bf16.msra.mxu0 %v850
      %1191 = vmatpush.bf16.msra.mxu0 %v846
      %1192 = vmatpush.bf16.msra.mxu0 %v842
      %1193 = vmatpush.bf16.msra.mxu0 %v838
      %1194 = vmatpush.bf16.msra.mxu0 %v834
      %1195 = vmatpush.bf16.msra.mxu0 %v830
      %1196 = vmatmul.bf16.gmra.mxu0 %v436
      %v1197 = vpop.f32.mrf.mxu0
      %v1198 = vadd.f32 %v424, %v1197
      %v1199 = vpop.f32.mrf.mxu0
      %1200 = vdwg.mxu0
      %1201 = vmatpush.bf16.msra.mxu0 %v890
      %1202 = vmatpush.bf16.msra.mxu0 %v886
      %1203 = vmatpush.bf16.msra.mxu0 %v882
      %1204 = vmatpush.bf16.msra.mxu0 %v878
      %1205 = vmatpush.bf16.msra.mxu0 %v874
      %1206 = vmatpush.bf16.msra.mxu0 %v870
      %1207 = vmatpush.bf16.msra.mxu0 %v866
      %1208 = vmatpush.bf16.msra.mxu0 %v862
      %1209 = vmatmul.bf16.gmra.mxu0 %v437
      %v1210 = vpop.f32.mrf.mxu0
      %v1211 = vadd.f32 %v1198, %v1210
      %v1212 = vpop.f32.mrf.mxu0
      %1213 = vdwg.mxu0
      %1214 = vmatpush.bf16.msra.mxu0 %v922
      %1215 = vmatpush.bf16.msra.mxu0 %v918
      %1216 = vmatpush.bf16.msra.mxu0 %v914
      %1217 = vmatpush.bf16.msra.mxu0 %v910
      %1218 = vmatpush.bf16.msra.mxu0 %v906
      %1219 = vmatpush.bf16.msra.mxu0 %v902
      %1220 = vmatpush.bf16.msra.mxu0 %v898
      %1221 = vmatpush.bf16.msra.mxu0 %v894
      %1222 = vmatmul.bf16.gmra.mxu0 %v438
      %v1223 = vpop.f32.mrf.mxu0
      %v1224 = vadd.f32 %v1211, %v1223
      %v1225 = vpop.f32.mrf.mxu0
      %1226 = vdwg.mxu0
      %1227 = vmatpush.bf16.msra.mxu0 %v954
      %1228 = vmatpush.bf16.msra.mxu0 %v950
      %1229 = vmatpush.bf16.msra.mxu0 %v946
      %1230 = vmatpush.bf16.msra.mxu0 %v942
      %1231 = vmatpush.bf16.msra.mxu0 %v938
      %1232 = vmatpush.bf16.msra.mxu0 %v934
      %1233 = vmatpush.bf16.msra.mxu0 %v930
      %1234 = vmatpush.bf16.msra.mxu0 %v926
      %1235 = vmatmul.bf16.gmra.mxu0 %v439
      %v1236 = vpop.f32.mrf.mxu0
      %v1237 = vadd.f32 %v1224, %v1236
      %v1238 = vpop.f32.mrf.mxu0
      %1239 = vdwg.mxu0
      %1240 = vmatpush.bf16.msra.mxu0 %v859
      %1241 = vmatpush.bf16.msra.mxu0 %v855
      %1242 = vmatpush.bf16.msra.mxu0 %v851
      %1243 = vmatpush.bf16.msra.mxu0 %v847
      %1244 = vmatpush.bf16.msra.mxu0 %v843
      %1245 = vmatpush.bf16.msra.mxu0 %v839
      %1246 = vmatpush.bf16.msra.mxu0 %v835
      %1247 = vmatpush.bf16.msra.mxu0 %v831
      %1248 = vmatmul.bf16.gmra.mxu0 %v436
      %v1249 = vpop.f32.mrf.mxu0
      %v1250 = vadd.f32 %v425, %v1249
      %v1251 = vpop.f32.mrf.mxu0
      %1252 = vdwg.mxu0
      %1253 = vmatpush.bf16.msra.mxu0 %v891
      %1254 = vmatpush.bf16.msra.mxu0 %v887
      %1255 = vmatpush.bf16.msra.mxu0 %v883
      %1256 = vmatpush.bf16.msra.mxu0 %v879
      %1257 = vmatpush.bf16.msra.mxu0 %v875
      %1258 = vmatpush.bf16.msra.mxu0 %v871
      %1259 = vmatpush.bf16.msra.mxu0 %v867
      %1260 = vmatpush.bf16.msra.mxu0 %v863
      %1261 = vmatmul.bf16.gmra.mxu0 %v437
      %v1262 = vpop.f32.mrf.mxu0
      %v1263 = vadd.f32 %v1250, %v1262
      %v1264 = vpop.f32.mrf.mxu0
      %1265 = vdwg.mxu0
      %1266 = vmatpush.bf16.msra.mxu0 %v923
      %1267 = vmatpush.bf16.msra.mxu0 %v919
      %1268 = vmatpush.bf16.msra.mxu0 %v915
      %1269 = vmatpush.bf16.msra.mxu0 %v911
      %1270 = vmatpush.bf16.msra.mxu0 %v907
      %1271 = vmatpush.bf16.msra.mxu0 %v903
      %1272 = vmatpush.bf16.msra.mxu0 %v899
      %1273 = vmatpush.bf16.msra.mxu0 %v895
      %1274 = vmatmul.bf16.gmra.mxu0 %v438
      %v1275 = vpop.f32.mrf.mxu0
      %v1276 = vadd.f32 %v1263, %v1275
      %v1277 = vpop.f32.mrf.mxu0
      %1278 = vdwg.mxu0
      %1279 = vmatpush.bf16.msra.mxu0 %v955
      %1280 = vmatpush.bf16.msra.mxu0 %v951
      %1281 = vmatpush.bf16.msra.mxu0 %v947
      %1282 = vmatpush.bf16.msra.mxu0 %v943
      %1283 = vmatpush.bf16.msra.mxu0 %v939
      %1284 = vmatpush.bf16.msra.mxu0 %v935
      %1285 = vmatpush.bf16.msra.mxu0 %v931
      %1286 = vmatpush.bf16.msra.mxu0 %v927
      %1287 = vmatmul.bf16.gmra.mxu0 %v439
      %v1288 = vpop.f32.mrf.mxu0
      %v1289 = vadd.f32 %v1276, %v1288
      %v1290 = vpop.f32.mrf.mxu0
      %1291 = vdwg.mxu0
      %v1292 = vmax.f32 %v1133, 0.0
      %v1293 = vmax.f32 %v1185, 0.0
      %v1294 = vmax.f32 %v1237, 0.0
      %v1295 = vmax.f32 %v1289, 0.0
      %v1296 = vpack.c.bf16 %v1292, %v1292
      %v1297 = vpack.c.bf16 %v1293, %v1293
      %v1298 = vpack.c.bf16 %v1294, %v1294
      %v1299 = vpack.c.bf16 %v1295, %v1295
      %v1301 = vperm.slane %v418, 0
      %v1302 = vperm.slane %v418, 1
      %v1369 = vunpack.c.l.b16 %v353
      %v1370 = vunpack.c.h.b16 %v353
      %v1371 = vunpack.c.l.b16 %v354
      %v1372 = vunpack.c.h.b16 %v354
      %v1373 = vunpack.c.l.b16 %v355
      %v1374 = vunpack.c.h.b16 %v355
      %v1375 = vunpack.c.l.b16 %v356
      %v1376 = vunpack.c.h.b16 %v356
      %v1377 = vunpack.c.l.b16 %v357
      %v1378 = vunpack.c.h.b16 %v357
      %v1379 = vunpack.c.l.b16 %v358
      %v1380 = vunpack.c.h.b16 %v358
      %v1381 = vunpack.c.l.b16 %v359
      %v1382 = vunpack.c.h.b16 %v359
      %v1383 = vunpack.c.l.b16 %v360
      %v1384 = vunpack.c.h.b16 %v360
      %v1385 = vunpack.c.l.b16 %v361
      %v1386 = vunpack.c.h.b16 %v361
      %v1387 = vunpack.c.l.b16 %v362
      %v1388 = vunpack.c.h.b16 %v362
      %v1389 = vunpack.c.l.b16 %v363
      %v1390 = vunpack.c.h.b16 %v363
      %v1391 = vunpack.c.l.b16 %v364
      %v1392 = vunpack.c.h.b16 %v364
      %v1393 = vunpack.c.l.b16 %v365
      %v1394 = vunpack.c.h.b16 %v365
      %v1395 = vunpack.c.l.b16 %v366
      %v1396 = vunpack.c.h.b16 %v366
      %v1397 = vunpack.c.l.b16 %v367
      %v1398 = vunpack.c.h.b16 %v367
      %v1399 = vunpack.c.l.b16 %v368
      %v1400 = vunpack.c.h.b16 %v368
      %v1401 = vunpack.c.l.b16 %v369
      %v1402 = vunpack.c.h.b16 %v369
      %v1403 = vunpack.c.l.b16 %v370
      %v1404 = vunpack.c.h.b16 %v370
      %v1405 = vunpack.c.l.b16 %v371
      %v1406 = vunpack.c.h.b16 %v371
      %v1407 = vunpack.c.l.b16 %v372
      %v1408 = vunpack.c.h.b16 %v372
      %v1409 = vunpack.c.l.b16 %v373
      %v1410 = vunpack.c.h.b16 %v373
      %v1411 = vunpack.c.l.b16 %v374
      %v1412 = vunpack.c.h.b16 %v374
      %v1413 = vunpack.c.l.b16 %v375
      %v1414 = vunpack.c.h.b16 %v375
      %v1415 = vunpack.c.l.b16 %v376
      %v1416 = vunpack.c.h.b16 %v376
      %v1417 = vunpack.c.l.b16 %v377
      %v1418 = vunpack.c.h.b16 %v377
      %v1419 = vunpack.c.l.b16 %v378
      %v1420 = vunpack.c.h.b16 %v378
      %v1421 = vunpack.c.l.b16 %v379
      %v1422 = vunpack.c.h.b16 %v379
      %v1423 = vunpack.c.l.b16 %v380
      %v1424 = vunpack.c.h.b16 %v380
      %v1425 = vunpack.c.l.b16 %v381
      %v1426 = vunpack.c.h.b16 %v381
      %v1427 = vunpack.c.l.b16 %v382
      %v1428 = vunpack.c.h.b16 %v382
      %v1429 = vunpack.c.l.b16 %v383
      %v1430 = vunpack.c.h.b16 %v383
      %v1431 = vunpack.c.l.b16 %v384
      %v1432 = vunpack.c.h.b16 %v384
      %v1433 = vunpack.c.l.b16 %v385
      %v1434 = vunpack.c.h.b16 %v385
      %v1435 = vunpack.c.l.b16 %v386
      %v1436 = vunpack.c.h.b16 %v386
      %v1437 = vunpack.c.l.b16 %v387
      %v1438 = vunpack.c.h.b16 %v387
      %v1439 = vunpack.c.l.b16 %v388
      %v1440 = vunpack.c.h.b16 %v388
      %v1441 = vunpack.c.l.b16 %v389
      %v1442 = vunpack.c.h.b16 %v389
      %v1443 = vunpack.c.l.b16 %v390
      %v1444 = vunpack.c.h.b16 %v390
      %v1445 = vunpack.c.l.b16 %v391
      %v1446 = vunpack.c.h.b16 %v391
      %v1447 = vunpack.c.l.b16 %v392
      %v1448 = vunpack.c.h.b16 %v392
      %v1449 = vunpack.c.l.b16 %v393
      %v1450 = vunpack.c.h.b16 %v393
      %v1451 = vunpack.c.l.b16 %v394
      %v1452 = vunpack.c.h.b16 %v394
      %v1453 = vunpack.c.l.b16 %v395
      %v1454 = vunpack.c.h.b16 %v395
      %v1455 = vunpack.c.l.b16 %v396
      %v1456 = vunpack.c.h.b16 %v396
      %v1457 = vunpack.c.l.b16 %v397
      %v1458 = vunpack.c.h.b16 %v397
      %v1459 = vunpack.c.l.b16 %v398
      %v1460 = vunpack.c.h.b16 %v398
      %v1461 = vunpack.c.l.b16 %v399
      %v1462 = vunpack.c.h.b16 %v399
      %v1463 = vunpack.c.l.b16 %v400
      %v1464 = vunpack.c.h.b16 %v400
      %v1465 = vunpack.c.l.b16 %v401
      %v1466 = vunpack.c.h.b16 %v401
      %v1467 = vunpack.c.l.b16 %v402
      %v1468 = vunpack.c.h.b16 %v402
      %v1469 = vunpack.c.l.b16 %v403
      %v1470 = vunpack.c.h.b16 %v403
      %v1471 = vunpack.c.l.b16 %v404
      %v1472 = vunpack.c.h.b16 %v404
      %v1473 = vunpack.c.l.b16 %v405
      %v1474 = vunpack.c.h.b16 %v405
      %v1475 = vunpack.c.l.b16 %v406
      %v1476 = vunpack.c.h.b16 %v406
      %v1477 = vunpack.c.l.b16 %v407
      %v1478 = vunpack.c.h.b16 %v407
      %v1479 = vunpack.c.l.b16 %v408
      %v1480 = vunpack.c.h.b16 %v408
      %v1481 = vunpack.c.l.b16 %v409
      %v1482 = vunpack.c.h.b16 %v409
      %v1483 = vunpack.c.l.b16 %v410
      %v1484 = vunpack.c.h.b16 %v410
      %v1485 = vunpack.c.l.b16 %v411
      %v1486 = vunpack.c.h.b16 %v411
      %v1487 = vunpack.c.l.b16 %v412
      %v1488 = vunpack.c.h.b16 %v412
      %v1489 = vunpack.c.l.b16 %v413
      %v1490 = vunpack.c.h.b16 %v413
      %v1491 = vunpack.c.l.b16 %v414
      %v1492 = vunpack.c.h.b16 %v414
      %v1493 = vunpack.c.l.b16 %v415
      %v1494 = vunpack.c.h.b16 %v415
      %v1495 = vunpack.c.l.b16 %v416
      %v1496 = vunpack.c.h.b16 %v416
      %v1497 = vpack.c.b16 %v1371, %v1369
      %v1498 = vpack.c.b16 %v1372, %v1370
      %v1499 = vpack.c.b16 %v1375, %v1373
      %v1500 = vpack.c.b16 %v1376, %v1374
      %v1501 = vpack.c.b16 %v1379, %v1377
      %v1502 = vpack.c.b16 %v1380, %v1378
      %v1503 = vpack.c.b16 %v1383, %v1381
      %v1504 = vpack.c.b16 %v1384, %v1382
      %v1505 = vpack.c.b16 %v1387, %v1385
      %v1506 = vpack.c.b16 %v1388, %v1386
      %v1507 = vpack.c.b16 %v1391, %v1389
      %v1508 = vpack.c.b16 %v1392, %v1390
      %v1509 = vpack.c.b16 %v1395, %v1393
      %v1510 = vpack.c.b16 %v1396, %v1394
      %v1511 = vpack.c.b16 %v1399, %v1397
      %v1512 = vpack.c.b16 %v1400, %v1398
      %v1513 = vpack.c.b16 %v1403, %v1401
      %v1514 = vpack.c.b16 %v1404, %v1402
      %v1515 = vpack.c.b16 %v1407, %v1405
      %v1516 = vpack.c.b16 %v1408, %v1406
      %v1517 = vpack.c.b16 %v1411, %v1409
      %v1518 = vpack.c.b16 %v1412, %v1410
      %v1519 = vpack.c.b16 %v1415, %v1413
      %v1520 = vpack.c.b16 %v1416, %v1414
      %v1521 = vpack.c.b16 %v1419, %v1417
      %v1522 = vpack.c.b16 %v1420, %v1418
      %v1523 = vpack.c.b16 %v1423, %v1421
      %v1524 = vpack.c.b16 %v1424, %v1422
      %v1525 = vpack.c.b16 %v1427, %v1425
      %v1526 = vpack.c.b16 %v1428, %v1426
      %v1527 = vpack.c.b16 %v1431, %v1429
      %v1528 = vpack.c.b16 %v1432, %v1430
      %v1529 = vpack.c.b16 %v1435, %v1433
      %v1530 = vpack.c.b16 %v1436, %v1434
      %v1531 = vpack.c.b16 %v1439, %v1437
      %v1532 = vpack.c.b16 %v1440, %v1438
      %v1533 = vpack.c.b16 %v1443, %v1441
      %v1534 = vpack.c.b16 %v1444, %v1442
      %v1535 = vpack.c.b16 %v1447, %v1445
      %v1536 = vpack.c.b16 %v1448, %v1446
      %v1537 = vpack.c.b16 %v1451, %v1449
      %v1538 = vpack.c.b16 %v1452, %v1450
      %v1539 = vpack.c.b16 %v1455, %v1453
      %v1540 = vpack.c.b16 %v1456, %v1454
      %v1541 = vpack.c.b16 %v1459, %v1457
      %v1542 = vpack.c.b16 %v1460, %v1458
      %v1543 = vpack.c.b16 %v1463, %v1461
      %v1544 = vpack.c.b16 %v1464, %v1462
      %v1545 = vpack.c.b16 %v1467, %v1465
      %v1546 = vpack.c.b16 %v1468, %v1466
      %v1547 = vpack.c.b16 %v1471, %v1469
      %v1548 = vpack.c.b16 %v1472, %v1470
      %v1549 = vpack.c.b16 %v1475, %v1473
      %v1550 = vpack.c.b16 %v1476, %v1474
      %v1551 = vpack.c.b16 %v1479, %v1477
      %v1552 = vpack.c.b16 %v1480, %v1478
      %v1553 = vpack.c.b16 %v1483, %v1481
      %v1554 = vpack.c.b16 %v1484, %v1482
      %v1555 = vpack.c.b16 %v1487, %v1485
      %v1556 = vpack.c.b16 %v1488, %v1486
      %v1557 = vpack.c.b16 %v1491, %v1489
      %v1558 = vpack.c.b16 %v1492, %v1490
      %v1559 = vpack.c.b16 %v1495, %v1493
      %v1560 = vpack.c.b16 %v1496, %v1494
      %1625 = vmatpush.bf16.msra.mxu0 %v1511
      %1626 = vmatpush.bf16.msra.mxu0 %v1509
      %1627 = vmatpush.bf16.msra.mxu0 %v1507
      %1628 = vmatpush.bf16.msra.mxu0 %v1505
      %1629 = vmatpush.bf16.msra.mxu0 %v1503
      %1630 = vmatpush.bf16.msra.mxu0 %v1501
      %1631 = vmatpush.bf16.msra.mxu0 %v1499
      %1632 = vmatpush.bf16.msra.mxu0 %v1497
      %1633 = vmatmul.bf16.gmra.mxu0 %v1296
      %v1634 = vpop.f32.mrf.mxu0
      %v1635 = vadd.f32 %v1301, %v1634
      %v1636 = vpop.f32.mrf.mxu0
      %1637 = vdwg.mxu0
      %1638 = vmatpush.bf16.msra.mxu0 %v1527
      %1639 = vmatpush.bf16.msra.mxu0 %v1525
      %1640 = vmatpush.bf16.msra.mxu0 %v1523
      %1641 = vmatpush.bf16.msra.mxu0 %v1521
      %1642 = vmatpush.bf16.msra.mxu0 %v1519
      %1643 = vmatpush.bf16.msra.mxu0 %v1517
      %1644 = vmatpush.bf16.msra.mxu0 %v1515
      %1645 = vmatpush.bf16.msra.mxu0 %v1513
      %1646 = vmatmul.bf16.gmra.mxu0 %v1297
      %v1647 = vpop.f32.mrf.mxu0
      %v1648 = vadd.f32 %v1635, %v1647
      %v1649 = vpop.f32.mrf.mxu0
      %1650 = vdwg.mxu0
      %1651 = vmatpush.bf16.msra.mxu0 %v1543
      %1652 = vmatpush.bf16.msra.mxu0 %v1541
      %1653 = vmatpush.bf16.msra.mxu0 %v1539
      %1654 = vmatpush.bf16.msra.mxu0 %v1537
      %1655 = vmatpush.bf16.msra.mxu0 %v1535
      %1656 = vmatpush.bf16.msra.mxu0 %v1533
      %1657 = vmatpush.bf16.msra.mxu0 %v1531
      %1658 = vmatpush.bf16.msra.mxu0 %v1529
      %1659 = vmatmul.bf16.gmra.mxu0 %v1298
      %v1660 = vpop.f32.mrf.mxu0
      %v1661 = vadd.f32 %v1648, %v1660
      %v1662 = vpop.f32.mrf.mxu0
      %1663 = vdwg.mxu0
      %1664 = vmatpush.bf16.msra.mxu0 %v1559
      %1665 = vmatpush.bf16.msra.mxu0 %v1557
      %1666 = vmatpush.bf16.msra.mxu0 %v1555
      %1667 = vmatpush.bf16.msra.mxu0 %v1553
      %1668 = vmatpush.bf16.msra.mxu0 %v1551
      %1669 = vmatpush.bf16.msra.mxu0 %v1549
      %1670 = vmatpush.bf16.msra.mxu0 %v1547
      %1671 = vmatpush.bf16.msra.mxu0 %v1545
      %1672 = vmatmul.bf16.gmra.mxu0 %v1299
      %v1673 = vpop.f32.mrf.mxu0
      %v1674 = vadd.f32 %v1661, %v1673
      %v1675 = vpop.f32.mrf.mxu0
      %1676 = vdwg.mxu0
      %1677 = vmatpush.bf16.msra.mxu0 %v1512
      %1678 = vmatpush.bf16.msra.mxu0 %v1510
      %1679 = vmatpush.bf16.msra.mxu0 %v1508
      %1680 = vmatpush.bf16.msra.mxu0 %v1506
      %1681 = vmatpush.bf16.msra.mxu0 %v1504
      %1682 = vmatpush.bf16.msra.mxu0 %v1502
      %1683 = vmatpush.bf16.msra.mxu0 %v1500
      %1684 = vmatpush.bf16.msra.mxu0 %v1498
      %1685 = vmatmul.bf16.gmra.mxu0 %v1296
      %v1686 = vpop.f32.mrf.mxu0
      %v1687 = vadd.f32 %v1302, %v1686
      %v1688 = vpop.f32.mrf.mxu0
      %1689 = vdwg.mxu0
      %1690 = vmatpush.bf16.msra.mxu0 %v1528
      %1691 = vmatpush.bf16.msra.mxu0 %v1526
      %1692 = vmatpush.bf16.msra.mxu0 %v1524
      %1693 = vmatpush.bf16.msra.mxu0 %v1522
      %1694 = vmatpush.bf16.msra.mxu0 %v1520
      %1695 = vmatpush.bf16.msra.mxu0 %v1518
      %1696 = vmatpush.bf16.msra.mxu0 %v1516
      %1697 = vmatpush.bf16.msra.mxu0 %v1514
      %1698 = vmatmul.bf16.gmra.mxu0 %v1297
      %v1699 = vpop.f32.mrf.mxu0
      %v1700 = vadd.f32 %v1687, %v1699
      %v1701 = vpop.f32.mrf.mxu0
      %1702 = vdwg.mxu0
      %1703 = vmatpush.bf16.msra.mxu0 %v1544
      %1704 = vmatpush.bf16.msra.mxu0 %v1542
      %1705 = vmatpush.bf16.msra.mxu0 %v1540
      %1706 = vmatpush.bf16.msra.mxu0 %v1538
      %1707 = vmatpush.bf16.msra.mxu0 %v1536
      %1708 = vmatpush.bf16.msra.mxu0 %v1534
      %1709 = vmatpush.bf16.msra.mxu0 %v1532
      %1710 = vmatpush.bf16.msra.mxu0 %v1530
      %1711 = vmatmul.bf16.gmra.mxu0 %v1298
      %v1712 = vpop.f32.mrf.mxu0
      %v1713 = vadd.f32 %v1700, %v1712
      %v1714 = vpop.f32.mrf.mxu0
      %1715 = vdwg.mxu0
      %1716 = vmatpush.bf16.msra.mxu0 %v1560
      %1717 = vmatpush.bf16.msra.mxu0 %v1558
      %1718 = vmatpush.bf16.msra.mxu0 %v1556
      %1719 = vmatpush.bf16.msra.mxu0 %v1554
      %1720 = vmatpush.bf16.msra.mxu0 %v1552
      %1721 = vmatpush.bf16.msra.mxu0 %v1550
      %1722 = vmatpush.bf16.msra.mxu0 %v1548
      %1723 = vmatpush.bf16.msra.mxu0 %v1546
      %1724 = vmatmul.bf16.gmra.mxu0 %v1299
      %v1725 = vpop.f32.mrf.mxu0
      %v1726 = vadd.f32 %v1713, %v1725
      %v1727 = vpop.f32.mrf.mxu0
      %1728 = vdwg.mxu0
      %v1729 = vpack.c.bf16 %v1726, %v1674
      %1730 = vst [vmem:[%s224] sm:$0xff] %v1729
      %p1731 = scmp.lt.s32.totalorder %s16, 2
      %s1732 = scalar_select %p1731, %s16, 2
      %s1733 = smul.addr %s1732, 2
      %s1734 = smul.addr %s1733, 4
      %s1735 = scalar_lea.vmem %s5, %s1734
      // Predicated region
      $region41: #{decoder_forward.1} parent=39 // pred_check
        %p1736 = pneg %p144
      $region42: #{decoder_forward.1} parent=39 // pred_check_branch
        %1738 = sbr.rel (%p1736) target = $region44
      $region43: #{decoder_forward.1} parent=39 // pred_region
        _
      $region44: #{decoder_forward.1} parent=39 // pred_fallthru
        _
    $region40: #{decoder_forward.1} parent=5 // pred_fallthru
      _
    %p1739 = scmp.le.s32.totalorder 2, %s11
    // Predicated region
    $region45: #{decoder_forward.1} parent=5 // pred_check
      %p1740 = pneg %p1739
    $region46: #{decoder_forward.1} parent=5 // pred_check_branch
      %1742 = sbr.rel (%p1740) target = $region48
    $region47: #{decoder_forward.1} parent=5 // pred_region
      %s1743 = ssub.s32 %s11, 2
      // Predicated region
      $region49: #{decoder_forward.1} parent=47 // pred_check
        %p1744 = pneg %p150
      $region50: #{decoder_forward.1} parent=47 // pred_check_branch
        %1746 = sbr.rel (%p1744) target = $region52
      $region51: #{decoder_forward.1} parent=47 // pred_region
        %p1747 = scmp.lt.s32.totalorder %s17, 2
        %s1748 = scalar_select %p1747, %s17, 2
        %s1749 = smul.addr %s1748, 2
        %s1750 = smul.addr %s1749, 4
        %s1751 = scalar_lea.vmem %s5, %s1750
      $region52: #{decoder_forward.1} parent=47 // pred_fallthru
        _
    $region48: #{decoder_forward.1} parent=5 // pred_fallthru
      _
  $region6: #{decoder_forward.1} parent=0 // loop_footer
    %s15 = sadd.s32 1, %s11
  $region7: #{decoder_forward.1} parent=0 // loop_footer_branch
    %10 = sbr.rel target = $region3
  $region8: #{decoder_forward.1} parent=0 // loop_exit
    _

</llo_original>
